<compile_context>
chip_gen: v7x
topology: tpu7x:2x2x1
jax: 0.10.0
libtpu: 0.0.40
codegen_flags: <defaults>
</compile_context>

<pallas_src>
import functools

import jax
import jax.numpy as jnp
from jax.experimental import pallas as pl
from jax.experimental.pallas import tpu as pltpu

NEG_SLOPE = 0.2  # LeakyReLU(negative_slope=0.2)


def _round_up(n, m):
    return ((n + m - 1) // m) * m


def _leaky(x):
    return jnp.where(x > 0, x, NEG_SLOPE * x)


def net_critic_kernel(x_ref,
                      w1_ref, b1_ref, w2_ref, b2_ref,   # rb1.fc1, rb1.fc2
                      w3_ref, b3_ref, w4_ref, b4_ref,   # rb2.fc1, rb2.fc2
                      wo_ref, bo_ref,                   # out (lane-padded)
                      o_ref):
    f32 = jnp.float32
    bf16 = jnp.bfloat16

    x = x_ref[...]                                      # (TB, D) f32
    x_bf = x.astype(bf16)

    # --- ResBlock 1 (Fin == Fout -> identity skip) ---
    h1 = _leaky(jnp.dot(x_bf, w1_ref[...], preferred_element_type=f32)
                + b1_ref[...])                          # (TB, H) f32
    y1 = _leaky(x
                + jnp.dot(h1.astype(bf16), w2_ref[...], preferred_element_type=f32)
                + b2_ref[...])                          # (TB, D) f32

    # --- ResBlock 2 on xc = concat([X0, y1]) (full-width K=2D matmuls) ---
    xc = jnp.concatenate([x, y1], axis=-1)              # (TB, 2D) f32
    h2 = _leaky(jnp.dot(xc.astype(bf16), w3_ref[...], preferred_element_type=f32)
                + b3_ref[...])                          # (TB, H) f32
    y2 = _leaky(xc
                + jnp.dot(h2.astype(bf16), w4_ref[...], preferred_element_type=f32)
                + b4_ref[...])                          # (TB, 2D) f32

    # --- final linear (lane-dense padded output) ---
    o_ref[...] = (jnp.dot(y2.astype(bf16), wo_ref[...], preferred_element_type=f32)
                  + bo_ref[...])


@functools.partial(jax.jit, static_argnames=("out_dim", "block_b"))
def net_critic_forward(x, prep, *, out_dim, block_b=512):
    """x: (B, in_dim) float32. prep: output of prepare_params()."""
    B, D = x.shape
    out_pad = prep["bo"].shape[-1]

    # --- batch tile selection ---
    B8 = _round_up(B, 8)
    TB = min(block_b, B8)
    # Keep at least 2 grid steps when the batch allows it so the "parallel"
    # batch axis can be sharded across the two TensorCores on v7x.
    if (B8 // TB) < 2 and B8 >= 16:
        TB = _round_up(pl.cdiv(B8, 2), 8)
    Bp = _round_up(B, TB)
    if Bp != B:
        x = jnp.pad(x, ((0, Bp - B), (0, 0)))
    grid = (Bp // TB,)

    def const_spec(shape):
        # Constant block index -> loaded once, stays VMEM-resident across grid.
        n = len(shape)
        return pl.BlockSpec(shape, lambda i, _n=n: (0,) * _n)

    operands = (
        x,
        prep["w1"], prep["b1"], prep["w2"], prep["b2"],
        prep["w3"], prep["b3"], prep["w4"], prep["b4"],
        prep["wo"], prep["bo"],
    )
    in_specs = [pl.BlockSpec((TB, D), lambda i: (i, 0))]
    in_specs += [const_spec(op.shape) for op in operands[1:]]

    out = pl.pallas_call(
        net_critic_kernel,
        out_shape=jax.ShapeDtypeStruct((Bp, out_pad), jnp.float32),
        grid=grid,
        in_specs=in_specs,
        out_specs=pl.BlockSpec((TB, out_pad), lambda i: (i, 0)),
        compiler_params=pltpu.CompilerParams(
            dimension_semantics=("parallel",)),
    )(*operands)
    return out[:B, :out_dim]


def init_params(key, in_dim, out_dim, n_neurons=512):
    """nn.Linear-style init, weights pre-transposed to (in_features, out_features)."""
    def linear(k, fin, fout):
        kw, kb = jax.random.split(k)
        bound = 1.0 / jnp.sqrt(fin)
        w = jax.random.uniform(kw, (fin, fout), jnp.float32, -bound, bound)
        b = jax.random.uniform(kb, (1, fout), jnp.float32, -bound, bound)
        return w, b

    D, D2 = in_dim, 2 * in_dim
    k = jax.random.split(key, 5)
    w1, b1 = linear(k[0], D, n_neurons)     # rb1.fc1
    w2, b2 = linear(k[1], n_neurons, D)     # rb1.fc2
    w3, b3 = linear(k[2], D2, n_neurons)    # rb2.fc1
    w4, b4 = linear(k[3], n_neurons, D2)    # rb2.fc2
    wo, bo = linear(k[4], D2, out_dim)      # out
    return dict(w1=w1, b1=b1, w2=w2, b2=b2,
                w3=w3, b3=b3, w4=w4, b4=b4,
                wo=wo, bo=bo)


def prepare_params(p, out_dim):
    """Cast weights to bf16 (biases stay f32) and lane-pad the output head to a
    multiple of 128 so the final store is lane-dense."""
    bf = lambda w: w.astype(jnp.bfloat16)
    out_pad = _round_up(out_dim, 128)
    wo_p = jnp.pad(p["wo"], ((0, 0), (0, out_pad - out_dim)))
    bo_p = jnp.pad(p["bo"], ((0, 0), (0, out_pad - out_dim)))
    return dict(
        w1=bf(p["w1"]), b1=p["b1"], w2=bf(p["w2"]), b2=p["b2"],
        w3=bf(p["w3"]), b3=p["b3"], w4=bf(p["w4"]), b4=p["b4"],
        wo=bf(wo_p), bo=bo_p,
    )


def net_critic_reference(x, p):
    """Pure-JAX reference mirroring the PyTorch forward (concat form) with the
    same bf16-operand / f32-accumulate matmul quantization the kernel uses."""
    f32, bf16 = jnp.float32, jnp.bfloat16
    dot = lambda a, w: jnp.dot(a.astype(bf16), w.astype(bf16),
                               preferred_element_type=f32)
    lrelu = lambda v: jnp.where(v > 0, v, NEG_SLOPE * v)
    h1 = lrelu(dot(x, p["w1"]) + p["b1"])
    y1 = lrelu(x + dot(h1, p["w2"]) + p["b2"])
    xc = jnp.concatenate([x, y1], axis=-1)
    h2 = lrelu(dot(xc, p["w3"]) + p["b3"])
    y2 = lrelu(xc + dot(h2, p["w4"]) + p["b4"])
    return dot(y2, p["wo"]) + p["bo"]


if __name__ == "__main__":
    IN_DIM, OUT_DIM, N_NEURONS = 64, 8, 512

    key = jax.random.PRNGKey(0)
    k_x, k_p = jax.random.split(key)
    params = init_params(k_p, IN_DIM, OUT_DIM, N_NEURONS)
    prep = prepare_params(params, OUT_DIM)

    # B=256 exercises the 2-step batch grid (weights stay VMEM-resident);
    # B=10 exercises the ragged-batch padding path.
    for B in (256, 10):
        x = jax.random.normal(jax.random.fold_in(k_x, B), (B, IN_DIM), jnp.float32)
        out = net_critic_forward(x, prep, out_dim=OUT_DIM)
        out = jax.block_until_ready(out)

        ref = net_critic_reference(x, params)
        assert out.shape == (B, OUT_DIM), out.shape
        err = float(jnp.max(jnp.abs(out - ref)))
        assert jnp.allclose(out, ref, atol=2e-3, rtol=2e-3), err

    print("KERNEL_OK")
</pallas_src>

<mosaic_0001>
module attributes {stable_mosaic.version = 11 : i64} {
  func.func @net_critic_kernel(%arg0: i32, %arg1: memref<128x64xf32, #tpu.memory_space<vmem>>, %arg2: memref<64x512xbf16, #tpu.memory_space<vmem>>, %arg3: memref<1x512xf32, #tpu.memory_space<vmem>>, %arg4: memref<512x64xbf16, #tpu.memory_space<vmem>>, %arg5: memref<1x64xf32, #tpu.memory_space<vmem>>, %arg6: memref<128x512xbf16, #tpu.memory_space<vmem>>, %arg7: memref<1x512xf32, #tpu.memory_space<vmem>>, %arg8: memref<512x128xbf16, #tpu.memory_space<vmem>>, %arg9: memref<1x128xf32, #tpu.memory_space<vmem>>, %arg10: memref<128x128xbf16, #tpu.memory_space<vmem>>, %arg11: memref<1x128xf32, #tpu.memory_space<vmem>>, %arg12: memref<128x128xf32, #tpu.memory_space<vmem>>) attributes {dimension_semantics = [#tpu.dimension_semantics<parallel>], iteration_bounds = array<i64: 2>, scalar_prefetch = 0 : i64, scratch_operands = 0 : i64, tpu.core_type = #tpu.core_type<tc>, window_params = [{transform_indices = @transform_0, window_bounds = array<i64: 128, 64>}, {pipeline_mode = #tpu.pipeline_mode<synchronous>, transform_indices = @transform_1, window_bounds = array<i64: 64, 512>}, {pipeline_mode = #tpu.pipeline_mode<synchronous>, transform_indices = @transform_2, window_bounds = array<i64: 1, 512>}, {pipeline_mode = #tpu.pipeline_mode<synchronous>, transform_indices = @transform_3, window_bounds = array<i64: 512, 64>}, {pipeline_mode = #tpu.pipeline_mode<synchronous>, transform_indices = @transform_4, window_bounds = array<i64: 1, 64>}, {pipeline_mode = #tpu.pipeline_mode<synchronous>, transform_indices = @transform_5, window_bounds = array<i64: 128, 512>}, {pipeline_mode = #tpu.pipeline_mode<synchronous>, transform_indices = @transform_6, window_bounds = array<i64: 1, 512>}, {pipeline_mode = #tpu.pipeline_mode<synchronous>, transform_indices = @transform_7, window_bounds = array<i64: 512, 128>}, {pipeline_mode = #tpu.pipeline_mode<synchronous>, transform_indices = @transform_8, window_bounds = array<i64: 1, 128>}, {pipeline_mode = #tpu.pipeline_mode<synchronous>, transform_indices = @transform_9, window_bounds = array<i64: 128, 128>}, {pipeline_mode = #tpu.pipeline_mode<synchronous>, transform_indices = @transform_10, window_bounds = array<i64: 1, 128>}, {transform_indices = @transform_11, window_bounds = array<i64: 128, 128>}]} {
    %c0 = arith.constant 0 : index
    %c0_0 = arith.constant 0 : index
    %0 = vector.load %arg1[%c0, %c0_0] : memref<128x64xf32, #tpu.memory_space<vmem>>, vector<128x64xf32>
    %1 = arith.truncf %0 : vector<128x64xf32> to vector<128x64xbf16>
    %c0_1 = arith.constant 0 : index
    %c0_2 = arith.constant 0 : index
    %2 = vector.load %arg2[%c0_1, %c0_2] : memref<64x512xbf16, #tpu.memory_space<vmem>>, vector<64x512xbf16>
    %cst = arith.constant dense<0.000000e+00> : vector<128x512xf32>
    %3 = tpu.matmul %1, %2, %cst {dimension_numbers = #tpu.dot_dimension_numbers<[1], [0], [0], [1], [0, 0, 1, 1], [], []>} : vector<128x64xbf16>, vector<64x512xbf16>, vector<128x512xf32> -> vector<128x512xf32>
    %c0_3 = arith.constant 0 : index
    %c0_4 = arith.constant 0 : index
    %4 = vector.load %arg3[%c0_3, %c0_4] : memref<1x512xf32, #tpu.memory_space<vmem>>, vector<1x512xf32>
    %5 = vector.broadcast %4 : vector<1x512xf32> to vector<128x512xf32>
    %6 = arith.addf %3, %5 : vector<128x512xf32>
    %cst_5 = arith.constant 0.000000e+00 : f32
    %7 = vector.broadcast %cst_5 : f32 to vector<128x512xf32>
    %8 = arith.cmpf ogt, %6, %7 : vector<128x512xf32>
    %cst_6 = arith.constant 2.000000e-01 : f32
    %9 = vector.broadcast %cst_6 : f32 to vector<128x512xf32>
    %10 = arith.mulf %9, %6 : vector<128x512xf32>
    %11 = arith.select %8, %6, %10 : vector<128x512xi1>, vector<128x512xf32>
    %12 = arith.truncf %11 : vector<128x512xf32> to vector<128x512xbf16>
    %c0_7 = arith.constant 0 : index
    %c0_8 = arith.constant 0 : index
    %13 = vector.load %arg4[%c0_7, %c0_8] : memref<512x64xbf16, #tpu.memory_space<vmem>>, vector<512x64xbf16>
    %cst_9 = arith.constant dense<0.000000e+00> : vector<128x64xf32>
    %14 = tpu.matmul %12, %13, %cst_9 {dimension_numbers = #tpu.dot_dimension_numbers<[1], [0], [0], [1], [0, 0, 1, 1], [], []>} : vector<128x512xbf16>, vector<512x64xbf16>, vector<128x64xf32> -> vector<128x64xf32>
    %15 = arith.addf %0, %14 : vector<128x64xf32>
    %c0_10 = arith.constant 0 : index
    %c0_11 = arith.constant 0 : index
    %16 = vector.load %arg5[%c0_10, %c0_11] : memref<1x64xf32, #tpu.memory_space<vmem>>, vector<1x64xf32>
    %17 = vector.broadcast %16 : vector<1x64xf32> to vector<128x64xf32>
    %18 = arith.addf %15, %17 : vector<128x64xf32>
    %cst_12 = arith.constant 0.000000e+00 : f32
    %19 = vector.broadcast %cst_12 : f32 to vector<128x64xf32>
    %20 = arith.cmpf ogt, %18, %19 : vector<128x64xf32>
    %cst_13 = arith.constant 2.000000e-01 : f32
    %21 = vector.broadcast %cst_13 : f32 to vector<128x64xf32>
    %22 = arith.mulf %21, %18 : vector<128x64xf32>
    %23 = arith.select %20, %18, %22 : vector<128x64xi1>, vector<128x64xf32>
    %24 = tpu.concatenate %0, %23 in 1 : vector<128x64xf32>, vector<128x64xf32> -> vector<128x128xf32>
    %25 = arith.truncf %24 : vector<128x128xf32> to vector<128x128xbf16>
    %c0_14 = arith.constant 0 : index
    %c0_15 = arith.constant 0 : index
    %26 = vector.load %arg6[%c0_14, %c0_15] : memref<128x512xbf16, #tpu.memory_space<vmem>>, vector<128x512xbf16>
    %cst_16 = arith.constant dense<0.000000e+00> : vector<128x512xf32>
    %27 = tpu.matmul %25, %26, %cst_16 {dimension_numbers = #tpu.dot_dimension_numbers<[1], [0], [0], [1], [0, 0, 1, 1], [], []>} : vector<128x128xbf16>, vector<128x512xbf16>, vector<128x512xf32> -> vector<128x512xf32>
    %c0_17 = arith.constant 0 : index
    %c0_18 = arith.constant 0 : index
    %28 = vector.load %arg7[%c0_17, %c0_18] : memref<1x512xf32, #tpu.memory_space<vmem>>, vector<1x512xf32>
    %29 = vector.broadcast %28 : vector<1x512xf32> to vector<128x512xf32>
    %30 = arith.addf %27, %29 : vector<128x512xf32>
    %cst_19 = arith.constant 0.000000e+00 : f32
    %31 = vector.broadcast %cst_19 : f32 to vector<128x512xf32>
    %32 = arith.cmpf ogt, %30, %31 : vector<128x512xf32>
    %cst_20 = arith.constant 2.000000e-01 : f32
    %33 = vector.broadcast %cst_20 : f32 to vector<128x512xf32>
    %34 = arith.mulf %33, %30 : vector<128x512xf32>
    %35 = arith.select %32, %30, %34 : vector<128x512xi1>, vector<128x512xf32>
    %36 = arith.truncf %35 : vector<128x512xf32> to vector<128x512xbf16>
    %c0_21 = arith.constant 0 : index
    %c0_22 = arith.constant 0 : index
    %37 = vector.load %arg8[%c0_21, %c0_22] : memref<512x128xbf16, #tpu.memory_space<vmem>>, vector<512x128xbf16>
    %cst_23 = arith.constant dense<0.000000e+00> : vector<128x128xf32>
    %38 = tpu.matmul %36, %37, %cst_23 {dimension_numbers = #tpu.dot_dimension_numbers<[1], [0], [0], [1], [0, 0, 1, 1], [], []>} : vector<128x512xbf16>, vector<512x128xbf16>, vector<128x128xf32> -> vector<128x128xf32>
    %39 = arith.addf %24, %38 : vector<128x128xf32>
    %c0_24 = arith.constant 0 : index
    %c0_25 = arith.constant 0 : index
    %40 = vector.load %arg9[%c0_24, %c0_25] : memref<1x128xf32, #tpu.memory_space<vmem>>, vector<1x128xf32>
    %41 = vector.broadcast %40 : vector<1x128xf32> to vector<128x128xf32>
    %42 = arith.addf %39, %41 : vector<128x128xf32>
    %cst_26 = arith.constant 0.000000e+00 : f32
    %43 = vector.broadcast %cst_26 : f32 to vector<128x128xf32>
    %44 = arith.cmpf ogt, %42, %43 : vector<128x128xf32>
    %cst_27 = arith.constant 2.000000e-01 : f32
    %45 = vector.broadcast %cst_27 : f32 to vector<128x128xf32>
    %46 = arith.mulf %45, %42 : vector<128x128xf32>
    %47 = arith.select %44, %42, %46 : vector<128x128xi1>, vector<128x128xf32>
    %48 = arith.truncf %47 : vector<128x128xf32> to vector<128x128xbf16>
    %c0_28 = arith.constant 0 : index
    %c0_29 = arith.constant 0 : index
    %49 = vector.load %arg10[%c0_28, %c0_29] : memref<128x128xbf16, #tpu.memory_space<vmem>>, vector<128x128xbf16>
    %cst_30 = arith.constant dense<0.000000e+00> : vector<128x128xf32>
    %50 = tpu.matmul %48, %49, %cst_30 {dimension_numbers = #tpu.dot_dimension_numbers<[1], [0], [0], [1], [0, 0, 1, 1], [], []>} : vector<128x128xbf16>, vector<128x128xbf16>, vector<128x128xf32> -> vector<128x128xf32>
    %c0_31 = arith.constant 0 : index
    %c0_32 = arith.constant 0 : index
    %51 = vector.load %arg11[%c0_31, %c0_32] : memref<1x128xf32, #tpu.memory_space<vmem>>, vector<1x128xf32>
    %52 = vector.broadcast %51 : vector<1x128xf32> to vector<128x128xf32>
    %53 = arith.addf %50, %52 : vector<128x128xf32>
    %c0_33 = arith.constant 0 : index
    %c0_34 = arith.constant 0 : index
    %54 = vector.load %arg12[%c0_33, %c0_34] : memref<128x128xf32, #tpu.memory_space<vmem>>, vector<128x128xf32>
    tpu.vector_store %arg12[%c0_33, %c0_34], %53 {strides = array<i32>} : memref<128x128xf32, #tpu.memory_space<vmem>>, vector<128x128xf32>,
    return
  }
  func.func @transform_0(%arg0: i32) -> (i32, i32) {
    %c0_i32 = arith.constant 0 : i32
    %c0_i32_0 = arith.constant 0 : i32
    return %arg0, %c0_i32 : i32, i32
  }
  func.func @transform_1(%arg0: i32) -> (i32, i32) {
    %c0_i32 = arith.constant 0 : i32
    %c0_i32_0 = arith.constant 0 : i32
    %c0_i32_1 = arith.constant 0 : i32
    return %c0_i32, %c0_i32_0 : i32, i32
  }
  func.func @transform_2(%arg0: i32) -> (i32, i32) {
    %c0_i32 = arith.constant 0 : i32
    %c0_i32_0 = arith.constant 0 : i32
    %c0_i32_1 = arith.constant 0 : i32
    return %c0_i32, %c0_i32_0 : i32, i32
  }
  func.func @transform_3(%arg0: i32) -> (i32, i32) {
    %c0_i32 = arith.constant 0 : i32
    %c0_i32_0 = arith.constant 0 : i32
    %c0_i32_1 = arith.constant 0 : i32
    return %c0_i32, %c0_i32_0 : i32, i32
  }
  func.func @transform_4(%arg0: i32) -> (i32, i32) {
    %c0_i32 = arith.constant 0 : i32
    %c0_i32_0 = arith.constant 0 : i32
    %c0_i32_1 = arith.constant 0 : i32
    return %c0_i32, %c0_i32_0 : i32, i32
  }
  func.func @transform_5(%arg0: i32) -> (i32, i32) {
    %c0_i32 = arith.constant 0 : i32
    %c0_i32_0 = arith.constant 0 : i32
    %c0_i32_1 = arith.constant 0 : i32
    return %c0_i32, %c0_i32_0 : i32, i32
  }
  func.func @transform_6(%arg0: i32) -> (i32, i32) {
    %c0_i32 = arith.constant 0 : i32
    %c0_i32_0 = arith.constant 0 : i32
    %c0_i32_1 = arith.constant 0 : i32
    return %c0_i32, %c0_i32_0 : i32, i32
  }
  func.func @transform_7(%arg0: i32) -> (i32, i32) {
    %c0_i32 = arith.constant 0 : i32
    %c0_i32_0 = arith.constant 0 : i32
    %c0_i32_1 = arith.constant 0 : i32
    return %c0_i32, %c0_i32_0 : i32, i32
  }
  func.func @transform_8(%arg0: i32) -> (i32, i32) {
    %c0_i32 = arith.constant 0 : i32
    %c0_i32_0 = arith.constant 0 : i32
    %c0_i32_1 = arith.constant 0 : i32
    return %c0_i32, %c0_i32_0 : i32, i32
  }
  func.func @transform_9(%arg0: i32) -> (i32, i32) {
    %c0_i32 = arith.constant 0 : i32
    %c0_i32_0 = arith.constant 0 : i32
    %c0_i32_1 = arith.constant 0 : i32
    return %c0_i32, %c0_i32_0 : i32, i32
  }
  func.func @transform_10(%arg0: i32) -> (i32, i32) {
    %c0_i32 = arith.constant 0 : i32
    %c0_i32_0 = arith.constant 0 : i32
    %c0_i32_1 = arith.constant 0 : i32
    return %c0_i32, %c0_i32_0 : i32, i32
  }
  func.func @transform_11(%arg0: i32) -> (i32, i32) {
    %c0_i32 = arith.constant 0 : i32
    %c0_i32_0 = arith.constant 0 : i32
    return %arg0, %c0_i32 : i32, i32
  }
}

</mosaic_0001>

<llo_original>
// kernel: net_critic_forward.1
$region0: #{net_critic_forward.1}
  #allocation0 [shape = 'u32[]', space=smem, size = 0x4, offset = 0x4, fixed_abs, tag = 'smem constant byte address 0x4 - core index']
  #allocation1 [shape = 'u32[144,128]{1,0:T(1,128)}', space=vmem, size = 0x12000, scoped, tag = 'internal scratch']
  %s0 = inlined_call_operand.vmem [shape: f32[256,64], index: 0, kind: input, shape index: {}]
  %s1 = inlined_call_operand.vmem [shape: bf16[64,512], index: 1, kind: input, shape index: {}]
  %s2 = inlined_call_operand.hbm [shape: f32[1,512], index: 2, kind: input, shape index: {}]
  %s3 = inlined_call_operand.vmem [shape: bf16[512,64], index: 3, kind: input, shape index: {}]
  %s4 = inlined_call_operand.hbm [shape: f32[1,64], index: 4, kind: input, shape index: {}]
  %s5 = inlined_call_operand.vmem [shape: bf16[128,512], index: 5, kind: input, shape index: {}]
  %s6 = inlined_call_operand.vmem [shape: f32[1,512], index: 6, kind: input, shape index: {}]
  %s7 = inlined_call_operand.vmem [shape: bf16[512,128], index: 7, kind: input, shape index: {}]
  %s8 = inlined_call_operand.vmem [shape: f32[1,128], index: 8, kind: input, shape index: {}]
  %s9 = inlined_call_operand.hbm [shape: bf16[128,128], index: 9, kind: input, shape index: {}]
  %s10 = inlined_call_operand.vmem [shape: f32[1,128], index: 10, kind: input, shape index: {}]
  %s11 = inlined_call_operand.vmem [shape: f32[256,128], index: 11, kind: output, shape index: {}]
  %s12 = sld [smem:[#allocation0]]
  $region89: #{net_critic_forward.1} parent=0
    _
  %s14 = ssub.s32 1, %s12
  %s15 = scalar_select 0, %s14, %s12
  $region1: #{net_critic_forward.1} parent=0
    #allocation2 [shape = 'u8[2048]{0}', space=vmem, size = 0x800, scoped, tag = 'input window, operand 2, single buffered']
    #allocation3 [shape = 's32[2]{0}', space=sflag, size = 0x8, scoped, tag = 'scoped memory for net_critic_forward.1']
    #allocation4 [shape = 'u8[512]{0}', space=vmem, size = 0x400, scoped, tag = 'input window, operand 4, single buffered']
    #allocation5 [shape = 's32[1]{0}', space=sflag, size = 0x4, scoped, tag = 'scoped memory for net_critic_forward.1']
    #allocation6 [shape = 'u8[32768]{0}', space=vmem, size = 0x8000, scoped, tag = 'input window, operand 9, single buffered']
    %16 = vsyncpa [#allocation3], 0
    %17 = vsyncpa [#allocation5], 0
    loop: start=0, step=1, limit=4
    $region2: #{net_critic_forward.1} parent=1 // loop_pre_header
      _
    $region3: #{net_critic_forward.1} parent=1 // loop_header
      %s19 = sphi 0, %s23
      %p20 = scmp.ge.s32.totalorder %s19, 4
      %s29 = sphi 0, %s31
      %s32 = sphi 0, %s29
      %s33 = sphi 0, %s32
      %s49 = sphi 0, %s33
      %s53 = sphi 0, %s53
      %s55 = sphi 0, %s53
      %s56 = sphi 0, %s55
      %s70 = sphi 0, %s56
      %s74 = sphi 0, %s74
      %s76 = sphi 0, %s74
      %s77 = sphi 0, %s76
      %s91 = sphi 0, %s77
      %s95 = sphi 0, %s95
      %s97 = sphi 0, %s95
      %s98 = sphi 0, %s97
      %s112 = sphi 0, %s98
      %s116 = sphi 0, %s116
      %s118 = sphi 0, %s116
      %s119 = sphi 0, %s118
      %s133 = sphi 0, %s119
      %s137 = sphi 0, %s137
      %s139 = sphi 0, %s137
      %s140 = sphi 0, %s139
      %s154 = sphi 0, %s140
      %s158 = sphi 0, %s158
      %s160 = sphi 0, %s158
      %s161 = sphi 0, %s160
      %s175 = sphi 0, %s161
      %s179 = sphi 0, %s179
      %s181 = sphi 0, %s179
      %s182 = sphi 0, %s181
      %s196 = sphi 0, %s182
      %s200 = sphi 0, %s200
      %s202 = sphi 0, %s200
      %s203 = sphi 0, %s202
      %s217 = sphi 0, %s203
      %s221 = sphi 0, %s221
      %s223 = sphi 0, %s221
      %s224 = sphi 0, %s223
      %s238 = sphi 0, %s224
      %s242 = sphi 0, %s242
      %s244 = sphi 0, %s242
      %s245 = sphi 0, %s244
      %s259 = sphi 0, %s245
      %s265 = sphi 0, %s267
      %s268 = sphi 0, %s265
      %s269 = sphi 0, %s268
      %s285 = sphi 0, %s269
    $region4: #{net_critic_forward.1} parent=1 // loop_header_branch
      %22 = sbr.rel (%p20) target = $region8
    $region5: #{net_critic_forward.1} parent=1 // loop_body
      %s24 = ssub.s32 %s19, 1
      %s25 = ssub.s32 %s19, 2
      %s26 = sadd.s32 %s19, 1
      %s27 = ssub.s32 %s19, %s26
      %p28 = scmp.eq.s32.totalorder %s27, 0
      %s30 = sadd.s32 %s29, 1
      %s31 = scalar_select %p28, %s29, %s30
      %p34 = pneg %p28
      %p35 = scmp.eq.s32.totalorder %s19, 1
      %p36 = por %p34, %p35
      %p37 = scmp.ne.s32.totalorder %s29, %s32
      %p38 = scmp.eq.s32.totalorder %s19, 0
      %p39 = por %p37, %p38
      %p40 = scmp.ne.s32.totalorder %s29, %s32
      %p41 = scmp.eq.s32.totalorder %s24, 1
      %p42 = por %p40, %p41
      %p43 = scmp.ne.s32.totalorder %s32, %s33
      %p44 = scmp.eq.s32.totalorder %s24, 0
      %p45 = por %p43, %p44
      %p46 = scmp.ne.s32.totalorder %s32, %s33
      %p47 = scmp.eq.s32.totalorder %s25, 1
      %p48 = por %p46, %p47
      %p50 = scmp.ne.s32.totalorder %s33, %s49
      %p51 = scmp.eq.s32.totalorder %s25, 0
      %p52 = por %p50, %p51
      %s54 = sadd.s32 %s53, 1
      %p57 = scmp.eq.s32.totalorder %s19, 1
      %p58 = scmp.ne.s32.totalorder %s53, %s55
      %p59 = scmp.eq.s32.totalorder %s19, 0
      %p60 = por %p58, %p59
      %p61 = scmp.ne.s32.totalorder %s53, %s55
      %p62 = scmp.eq.s32.totalorder %s24, 1
      %p63 = por %p61, %p62
      %p64 = scmp.ne.s32.totalorder %s55, %s56
      %p65 = scmp.eq.s32.totalorder %s24, 0
      %p66 = por %p64, %p65
      %p67 = scmp.ne.s32.totalorder %s55, %s56
      %p68 = scmp.eq.s32.totalorder %s25, 1
      %p69 = por %p67, %p68
      %p71 = scmp.ne.s32.totalorder %s56, %s70
      %p72 = scmp.eq.s32.totalorder %s25, 0
      %p73 = por %p71, %p72
      %s75 = sadd.s32 %s74, 1
      %p78 = scmp.eq.s32.totalorder %s19, 1
      %p79 = scmp.ne.s32.totalorder %s74, %s76
      %p80 = scmp.eq.s32.totalorder %s19, 0
      %p81 = por %p79, %p80
      %p82 = scmp.ne.s32.totalorder %s74, %s76
      %p83 = scmp.eq.s32.totalorder %s24, 1
      %p84 = por %p82, %p83
      %p85 = scmp.ne.s32.totalorder %s76, %s77
      %p86 = scmp.eq.s32.totalorder %s24, 0
      %p87 = por %p85, %p86
      %p88 = scmp.ne.s32.totalorder %s76, %s77
      %p89 = scmp.eq.s32.totalorder %s25, 1
      %p90 = por %p88, %p89
      %p92 = scmp.ne.s32.totalorder %s77, %s91
      %p93 = scmp.eq.s32.totalorder %s25, 0
      %p94 = por %p92, %p93
      %s96 = sadd.s32 %s95, 1
      %p99 = scmp.eq.s32.totalorder %s19, 1
      %p100 = scmp.ne.s32.totalorder %s95, %s97
      %p101 = scmp.eq.s32.totalorder %s19, 0
      %p102 = por %p100, %p101
      %p103 = scmp.ne.s32.totalorder %s95, %s97
      %p104 = scmp.eq.s32.totalorder %s24, 1
      %p105 = por %p103, %p104
      %p106 = scmp.ne.s32.totalorder %s97, %s98
      %p107 = scmp.eq.s32.totalorder %s24, 0
      %p108 = por %p106, %p107
      %p109 = scmp.ne.s32.totalorder %s97, %s98
      %p110 = scmp.eq.s32.totalorder %s25, 1
      %p111 = por %p109, %p110
      %p113 = scmp.ne.s32.totalorder %s98, %s112
      %p114 = scmp.eq.s32.totalorder %s25, 0
      %p115 = por %p113, %p114
      %s117 = sadd.s32 %s116, 1
      %p120 = scmp.eq.s32.totalorder %s19, 1
      %p121 = scmp.ne.s32.totalorder %s116, %s118
      %p122 = scmp.eq.s32.totalorder %s19, 0
      %p123 = por %p121, %p122
      %p124 = scmp.ne.s32.totalorder %s116, %s118
      %p125 = scmp.eq.s32.totalorder %s24, 1
      %p126 = por %p124, %p125
      %p127 = scmp.ne.s32.totalorder %s118, %s119
      %p128 = scmp.eq.s32.totalorder %s24, 0
      %p129 = por %p127, %p128
      %p130 = scmp.ne.s32.totalorder %s118, %s119
      %p131 = scmp.eq.s32.totalorder %s25, 1
      %p132 = por %p130, %p131
      %p134 = scmp.ne.s32.totalorder %s119, %s133
      %p135 = scmp.eq.s32.totalorder %s25, 0
      %p136 = por %p134, %p135
      %s138 = sadd.s32 %s137, 1
      %p141 = scmp.eq.s32.totalorder %s19, 1
      %p142 = scmp.ne.s32.totalorder %s137, %s139
      %p143 = scmp.eq.s32.totalorder %s19, 0
      %p144 = por %p142, %p143
      %p145 = scmp.ne.s32.totalorder %s137, %s139
      %p146 = scmp.eq.s32.totalorder %s24, 1
      %p147 = por %p145, %p146
      %p148 = scmp.ne.s32.totalorder %s139, %s140
      %p149 = scmp.eq.s32.totalorder %s24, 0
      %p150 = por %p148, %p149
      %p151 = scmp.ne.s32.totalorder %s139, %s140
      %p152 = scmp.eq.s32.totalorder %s25, 1
      %p153 = por %p151, %p152
      %p155 = scmp.ne.s32.totalorder %s140, %s154
      %p156 = scmp.eq.s32.totalorder %s25, 0
      %p157 = por %p155, %p156
      %s159 = sadd.s32 %s158, 1
      %p162 = scmp.eq.s32.totalorder %s19, 1
      %p163 = scmp.ne.s32.totalorder %s158, %s160
      %p164 = scmp.eq.s32.totalorder %s19, 0
      %p165 = por %p163, %p164
      %p166 = scmp.ne.s32.totalorder %s158, %s160
      %p167 = scmp.eq.s32.totalorder %s24, 1
      %p168 = por %p166, %p167
      %p169 = scmp.ne.s32.totalorder %s160, %s161
      %p170 = scmp.eq.s32.totalorder %s24, 0
      %p171 = por %p169, %p170
      %p172 = scmp.ne.s32.totalorder %s160, %s161
      %p173 = scmp.eq.s32.totalorder %s25, 1
      %p174 = por %p172, %p173
      %p176 = scmp.ne.s32.totalorder %s161, %s175
      %p177 = scmp.eq.s32.totalorder %s25, 0
      %p178 = por %p176, %p177
      %s180 = sadd.s32 %s179, 1
      %p183 = scmp.eq.s32.totalorder %s19, 1
      %p184 = scmp.ne.s32.totalorder %s179, %s181
      %p185 = scmp.eq.s32.totalorder %s19, 0
      %p186 = por %p184, %p185
      %p187 = scmp.ne.s32.totalorder %s179, %s181
      %p188 = scmp.eq.s32.totalorder %s24, 1
      %p189 = por %p187, %p188
      %p190 = scmp.ne.s32.totalorder %s181, %s182
      %p191 = scmp.eq.s32.totalorder %s24, 0
      %p192 = por %p190, %p191
      %p193 = scmp.ne.s32.totalorder %s181, %s182
      %p194 = scmp.eq.s32.totalorder %s25, 1
      %p195 = por %p193, %p194
      %p197 = scmp.ne.s32.totalorder %s182, %s196
      %p198 = scmp.eq.s32.totalorder %s25, 0
      %p199 = por %p197, %p198
      %s201 = sadd.s32 %s200, 1
      %p204 = scmp.eq.s32.totalorder %s19, 1
      %p205 = scmp.ne.s32.totalorder %s200, %s202
      %p206 = scmp.eq.s32.totalorder %s19, 0
      %p207 = por %p205, %p206
      %p208 = scmp.ne.s32.totalorder %s200, %s202
      %p209 = scmp.eq.s32.totalorder %s24, 1
      %p210 = por %p208, %p209
      %p211 = scmp.ne.s32.totalorder %s202, %s203
      %p212 = scmp.eq.s32.totalorder %s24, 0
      %p213 = por %p211, %p212
      %p214 = scmp.ne.s32.totalorder %s202, %s203
      %p215 = scmp.eq.s32.totalorder %s25, 1
      %p216 = por %p214, %p215
      %p218 = scmp.ne.s32.totalorder %s203, %s217
      %p219 = scmp.eq.s32.totalorder %s25, 0
      %p220 = por %p218, %p219
      %s222 = sadd.s32 %s221, 1
      %p225 = scmp.eq.s32.totalorder %s19, 1
      %p226 = scmp.ne.s32.totalorder %s221, %s223
      %p227 = scmp.eq.s32.totalorder %s19, 0
      %p228 = por %p226, %p227
      %p229 = scmp.ne.s32.totalorder %s221, %s223
      %p230 = scmp.eq.s32.totalorder %s24, 1
      %p231 = por %p229, %p230
      %p232 = scmp.ne.s32.totalorder %s223, %s224
      %p233 = scmp.eq.s32.totalorder %s24, 0
      %p234 = por %p232, %p233
      %p235 = scmp.ne.s32.totalorder %s223, %s224
      %p236 = scmp.eq.s32.totalorder %s25, 1
      %p237 = por %p235, %p236
      %p239 = scmp.ne.s32.totalorder %s224, %s238
      %p240 = scmp.eq.s32.totalorder %s25, 0
      %p241 = por %p239, %p240
      %s243 = sadd.s32 %s242, 1
      %p246 = scmp.eq.s32.totalorder %s19, 1
      %p247 = scmp.ne.s32.totalorder %s242, %s244
      %p248 = scmp.eq.s32.totalorder %s19, 0
      %p249 = por %p247, %p248
      %p250 = scmp.ne.s32.totalorder %s242, %s244
      %p251 = scmp.eq.s32.totalorder %s24, 1
      %p252 = por %p250, %p251
      %p253 = scmp.ne.s32.totalorder %s244, %s245
      %p254 = scmp.eq.s32.totalorder %s24, 0
      %p255 = por %p253, %p254
      %p256 = scmp.ne.s32.totalorder %s244, %s245
      %p257 = scmp.eq.s32.totalorder %s25, 1
      %p258 = por %p256, %p257
      %p260 = scmp.ne.s32.totalorder %s245, %s259
      %p261 = scmp.eq.s32.totalorder %s25, 0
      %p262 = por %p260, %p261
      %s263 = ssub.s32 %s19, %s26
      %p264 = scmp.eq.s32.totalorder %s263, 0
      %s266 = sadd.s32 %s265, 1
      %s267 = scalar_select %p264, %s265, %s266
      %p270 = pneg %p264
      %p271 = scmp.eq.s32.totalorder %s19, 1
      %p272 = por %p270, %p271
      %p273 = scmp.ne.s32.totalorder %s265, %s268
      %p274 = scmp.eq.s32.totalorder %s19, 0
      %p275 = por %p273, %p274
      %p276 = scmp.ne.s32.totalorder %s265, %s268
      %p277 = scmp.eq.s32.totalorder %s24, 1
      %p278 = por %p276, %p277
      %p279 = scmp.ne.s32.totalorder %s268, %s269
      %p280 = scmp.eq.s32.totalorder %s24, 0
      %p281 = por %p279, %p280
      %p282 = scmp.ne.s32.totalorder %s268, %s269
      %p283 = scmp.eq.s32.totalorder %s25, 1
      %p284 = por %p282, %p283
      %p286 = scmp.ne.s32.totalorder %s269, %s285
      %p287 = scmp.eq.s32.totalorder %s25, 0
      %p288 = por %p286, %p287
      %p289 = scmp.le.s32.totalorder 1, %s19
      %p290 = scmp.lt.s32.totalorder %s19, 3
      %p291 = pnand %p289, %p290
      %p292 = pneg %p291
      // Predicated region
      $region9: #{net_critic_forward.1} parent=5 // pred_check
        _
      $region10: #{net_critic_forward.1} parent=5 // pred_check_branch
        %294 = sbr.rel (%p291) target = $region12
      $region11: #{net_critic_forward.1} parent=5 // pred_region
        %s295 = ssub.s32 %s19, 1
        // Predicated region
        $region13: #{net_critic_forward.1} parent=11 // pred_check
          %p296 = pneg %p66
        $region14: #{net_critic_forward.1} parent=11 // pred_check_branch
          %298 = sbr.rel (%p296) target = $region16
        $region15: #{net_critic_forward.1} parent=11 // pred_region
          _
        $region16: #{net_critic_forward.1} parent=11 // pred_fallthru
          _
        // Predicated region
        $region17: #{net_critic_forward.1} parent=11 // pred_check
          %p299 = pneg %p87
        $region18: #{net_critic_forward.1} parent=11 // pred_check_branch
          %301 = sbr.rel (%p299) target = $region20
        $region19: #{net_critic_forward.1} parent=11 // pred_region
          %s303 = ssub.s32 64, 64
          %304 = vsyncadd [#allocation3], %s303
          %s306 = sshll.u32 [#allocation2], 4
          %s307 = int_to_ptr.vmem [resolvable:$true] %s306
          %309 = dma.hbm_to_vmem [thread:$0]  %s2, 64, %s307, [#allocation3]
        $region20: #{net_critic_forward.1} parent=11 // pred_fallthru
          _
        // Predicated region
        $region21: #{net_critic_forward.1} parent=11 // pred_check
          %p310 = pneg %p108
        $region22: #{net_critic_forward.1} parent=11 // pred_check_branch
          %312 = sbr.rel (%p310) target = $region24
        $region23: #{net_critic_forward.1} parent=11 // pred_region
          _
        $region24: #{net_critic_forward.1} parent=11 // pred_fallthru
          _
        // Predicated region
        $region25: #{net_critic_forward.1} parent=11 // pred_check
          %p313 = pneg %p129
        $region26: #{net_critic_forward.1} parent=11 // pred_check_branch
          %315 = sbr.rel (%p313) target = $region28
        $region27: #{net_critic_forward.1} parent=11 // pred_region
          %s317 = ssub.s32 16, 16
          %318 = vsyncadd [#allocation5], %s317
          %s320 = sshll.u32 [#allocation4], 4
          %s321 = int_to_ptr.vmem [resolvable:$true] %s320
          %323 = dma.hbm_to_vmem [thread:$0]  %s4, 16, %s321, [#allocation5]
        $region28: #{net_critic_forward.1} parent=11 // pred_fallthru
          _
        // Predicated region
        $region29: #{net_critic_forward.1} parent=11 // pred_check
          %p324 = pneg %p150
        $region30: #{net_critic_forward.1} parent=11 // pred_check_branch
          %326 = sbr.rel (%p324) target = $region32
        $region31: #{net_critic_forward.1} parent=11 // pred_region
          _
        $region32: #{net_critic_forward.1} parent=11 // pred_fallthru
          _
        // Predicated region
        $region33: #{net_critic_forward.1} parent=11 // pred_check
          %p327 = pneg %p171
        $region34: #{net_critic_forward.1} parent=11 // pred_check_branch
          %329 = sbr.rel (%p327) target = $region36
        $region35: #{net_critic_forward.1} parent=11 // pred_region
          _
        $region36: #{net_critic_forward.1} parent=11 // pred_fallthru
          _
        // Predicated region
        $region37: #{net_critic_forward.1} parent=11 // pred_check
          %p330 = pneg %p192
        $region38: #{net_critic_forward.1} parent=11 // pred_check_branch
          %332 = sbr.rel (%p330) target = $region40
        $region39: #{net_critic_forward.1} parent=11 // pred_region
          _
        $region40: #{net_critic_forward.1} parent=11 // pred_fallthru
          _
        // Predicated region
        $region41: #{net_critic_forward.1} parent=11 // pred_check
          %p333 = pneg %p213
        $region42: #{net_critic_forward.1} parent=11 // pred_check_branch
          %335 = sbr.rel (%p333) target = $region44
        $region43: #{net_critic_forward.1} parent=11 // pred_region
          _
        $region44: #{net_critic_forward.1} parent=11 // pred_fallthru
          _
        // Predicated region
        $region45: #{net_critic_forward.1} parent=11 // pred_check
          %p336 = pneg %p234
        $region46: #{net_critic_forward.1} parent=11 // pred_check_branch
          %338 = sbr.rel (%p336) target = $region48
        $region47: #{net_critic_forward.1} parent=11 // pred_region
          %s340 = ssub.s32 1024, 1024
          %341 = vsyncadd [#allocation5], %s340
          %s342 = sshll.u32 [#allocation6], 4
          %s343 = int_to_ptr.vmem [resolvable:$true] %s342
          %348 = dma.hbm_to_vmem [thread:$0]  %s9, 1024, %s343, [#allocation5], 64, 64, 4
        $region48: #{net_critic_forward.1} parent=11 // pred_fallthru
          _
        // Predicated region
        $region49: #{net_critic_forward.1} parent=11 // pred_check
          %p349 = pneg %p255
        $region50: #{net_critic_forward.1} parent=11 // pred_check_branch
          %351 = sbr.rel (%p349) target = $region52
        $region51: #{net_critic_forward.1} parent=11 // pred_region
          _
        $region52: #{net_critic_forward.1} parent=11 // pred_fallthru
          _
      $region12: #{net_critic_forward.1} parent=5 // pred_fallthru
        _
      %p352 = scmp.lt.s32.totalorder %s19, 2
      // Predicated region
      $region53: #{net_critic_forward.1} parent=5 // pred_check
        %p353 = pneg %p352
      $region54: #{net_critic_forward.1} parent=5 // pred_check_branch
        %355 = sbr.rel (%p353) target = $region56
      $region55: #{net_critic_forward.1} parent=5 // pred_region
        // Predicated region
        $region57: #{net_critic_forward.1} parent=55 // pred_check
          %p356 = pneg %p39
        $region58: #{net_critic_forward.1} parent=55 // pred_check_branch
          %358 = sbr.rel (%p356) target = $region60
        $region59: #{net_critic_forward.1} parent=55 // pred_region
          %s359 = smul.u32 16, %s19
          %p360 = scmp.lt.s32.totalorder %s359, 31
          %s361 = scalar_select %p360, %s359, 31
          %s362 = smul.addr %s361, 8
          %s363 = scalar_lea.vmem %s0, %s362
          %s364 = smul.u32 16, %s19
        $region60: #{net_critic_forward.1} parent=55 // pred_fallthru
          _
      $region56: #{net_critic_forward.1} parent=5 // pred_fallthru
        _
      %p365 = scmp.le.s32.totalorder 1, %s19
      %p366 = scmp.lt.s32.totalorder %s19, 3
      %p367 = pnand %p365, %p366
      %p368 = pneg %p367
      // Predicated region
      $region61: #{net_critic_forward.1} parent=5 // pred_check
        _
      $region62: #{net_critic_forward.1} parent=5 // pred_check_branch
        %370 = sbr.rel (%p367) target = $region64
      $region63: #{net_critic_forward.1} parent=5 // pred_region
        %s371 = ssub.s32 %s19, 1
        // Predicated region
        $region65: #{net_critic_forward.1} parent=63 // pred_check
          %p372 = pneg %p87
        $region66: #{net_critic_forward.1} parent=63 // pred_check_branch
          %374 = sbr.rel (%p372) target = $region68
        $region67: #{net_critic_forward.1} parent=63 // pred_region
          %375 = dma.done [#allocation3], 64
        $region68: #{net_critic_forward.1} parent=63 // pred_fallthru
          _
        // Predicated region
        $region69: #{net_critic_forward.1} parent=63 // pred_check
          %p376 = pneg %p129
        $region70: #{net_critic_forward.1} parent=63 // pred_check_branch
          %378 = sbr.rel (%p376) target = $region72
        $region71: #{net_critic_forward.1} parent=63 // pred_region
          %379 = dma.done [#allocation5], 16
        $region72: #{net_critic_forward.1} parent=63 // pred_fallthru
          _
        // Predicated region
        $region73: #{net_critic_forward.1} parent=63 // pred_check
          %p380 = pneg %p234
        $region74: #{net_critic_forward.1} parent=63 // pred_check_branch
          %382 = sbr.rel (%p380) target = $region76
        $region75: #{net_critic_forward.1} parent=63 // pred_region
          %383 = dma.done [#allocation5], 1024
        $region76: #{net_critic_forward.1} parent=63 // pred_fallthru
          _
        %s384 = smul.u32 16, %s24
        %p385 = scmp.lt.s32.totalorder %s384, 31
        %s386 = scalar_select %p385, %s384, 31
        %s387 = smul.addr %s386, 8
        %s388 = scalar_lea.vmem %s0, %s387
        %p389 = pneg %p45
        %p390 = pneg %p42
        %p391 = pneg %p66
        %p392 = pneg %p63
        %p393 = pneg %p87
        %p394 = pneg %p84
        %p395 = pneg %p108
        %p396 = pneg %p105
        %p397 = pneg %p129
        %p398 = pneg %p126
        %p399 = pneg %p150
        %p400 = pneg %p147
        %p401 = pneg %p171
        %p402 = pneg %p168
        %p403 = pneg %p192
        %p404 = pneg %p189
        %p405 = pneg %p213
        %p406 = pneg %p210
        %p407 = pneg %p234
        %p408 = pneg %p231
        %p409 = pneg %p255
        %p410 = pneg %p252
        %p411 = pneg %p281
        %p412 = pneg %p278
        %s413 = smul.u32 16, %s24
        %p414 = scmp.lt.s32.totalorder %s413, 31
        %s415 = scalar_select %p414, %s413, 31
        %s416 = smul.addr %s415, 8
        %s417 = scalar_lea.vmem %s11, %s416
        %s418 = smul.u32 16, %s24
        %p419 = scmp.lt.s32.totalorder %s418, 31
        %s420 = scalar_select %p419, %s418, 31
        %s421 = smul.addr %s420, 8
        %s422 = scalar_lea.vmem %s0, %s421
        %s423 = smul.u32 16, %s24
        %s424 = smul.u32 16, %s24
        %p425 = scmp.lt.s32.totalorder %s424, 31
        %s426 = scalar_select %p425, %s424, 31
        %s427 = smul.addr %s426, 8
        %s428 = scalar_lea.vmem %s11, %s427
        %s429 = smul.u32 16, %s24
        %v431 = vld [vmem:[%s422] sm:$0xff]
        %v432 = vld [vmem:[%s422 + $0x8] sm:$0xff]
        %v433 = vld [vmem:[%s422 + $0x10] sm:$0xff]
        %v434 = vld [vmem:[%s422 + $0x18] sm:$0xff]
        %v435 = vld [vmem:[%s422 + $0x20] sm:$0xff]
        %v436 = vld [vmem:[%s422 + $0x28] sm:$0xff]
        %v437 = vld [vmem:[%s422 + $0x30] sm:$0xff]
        %v438 = vld [vmem:[%s422 + $0x38] sm:$0xff]
        %v439 = vld [vmem:[%s422 + $0x40] sm:$0xff]
        %v440 = vld [vmem:[%s422 + $0x48] sm:$0xff]
        %v441 = vld [vmem:[%s422 + $0x50] sm:$0xff]
        %v442 = vld [vmem:[%s422 + $0x58] sm:$0xff]
        %v443 = vld [vmem:[%s422 + $0x60] sm:$0xff]
        %v444 = vld [vmem:[%s422 + $0x68] sm:$0xff]
        %v445 = vld [vmem:[%s422 + $0x70] sm:$0xff]
        %v446 = vld [vmem:[%s422 + $0x78] sm:$0xff]
        %v447 = vpack.c.bf16 %v432, %v431
        %v448 = vpack.c.bf16 %v434, %v433
        %v449 = vpack.c.bf16 %v436, %v435
        %v450 = vpack.c.bf16 %v438, %v437
        %v451 = vpack.c.bf16 %v440, %v439
        %v452 = vpack.c.bf16 %v442, %v441
        %v453 = vpack.c.bf16 %v444, %v443
        %v454 = vpack.c.bf16 %v446, %v445
        %v455 = vld [vmem:[%s1] sm:$0xff]
        %v456 = vld [vmem:[%s1 + $0x8] sm:$0xff]
        %v457 = vld [vmem:[%s1 + $0x10] sm:$0xff]
        %v458 = vld [vmem:[%s1 + $0x18] sm:$0xff]
        %v459 = vld [vmem:[%s1 + $0x20] sm:$0xff]
        %v460 = vld [vmem:[%s1 + $0x28] sm:$0xff]
        %v461 = vld [vmem:[%s1 + $0x30] sm:$0xff]
        %v462 = vld [vmem:[%s1 + $0x38] sm:$0xff]
        %v463 = vld [vmem:[%s1 + $0x40] sm:$0xff]
        %v464 = vld [vmem:[%s1 + $0x48] sm:$0xff]
        %v465 = vld [vmem:[%s1 + $0x50] sm:$0xff]
        %v466 = vld [vmem:[%s1 + $0x58] sm:$0xff]
        %v467 = vld [vmem:[%s1 + $0x60] sm:$0xff]
        %v468 = vld [vmem:[%s1 + $0x68] sm:$0xff]
        %v469 = vld [vmem:[%s1 + $0x70] sm:$0xff]
        %v470 = vld [vmem:[%s1 + $0x78] sm:$0xff]
        %v471 = vld [vmem:[#allocation2] sm:$0xf]
        %v473 = vlaneseq
        %v474 = vshrl.u32 %v473, 7
        %v475 = vsub.s32 0, %v474
        %v476 = vrot.slane %v471, %v475
        %v477 = vlaneseq
        %v478 = vshrl.u32 %v477, 7
        %v479 = vsub.s32 1, %v478
        %v480 = vrot.slane %v471, %v479
        %v481 = vlaneseq
        %v482 = vshrl.u32 %v481, 7
        %v483 = vsub.s32 2, %v482
        %v484 = vrot.slane %v471, %v483
        %v485 = vlaneseq
        %v486 = vshrl.u32 %v485, 7
        %v487 = vsub.s32 3, %v486
        %v488 = vrot.slane %v471, %v487
        %v509 = vunpack.c.l.b16 %v455
        %v510 = vunpack.c.h.b16 %v455
        %v511 = vunpack.c.l.b16 %v456
        %v512 = vunpack.c.h.b16 %v456
        %v513 = vunpack.c.l.b16 %v457
        %v514 = vunpack.c.h.b16 %v457
        %v515 = vunpack.c.l.b16 %v458
        %v516 = vunpack.c.h.b16 %v458
        %v517 = vunpack.c.l.b16 %v459
        %v518 = vunpack.c.h.b16 %v459
        %v519 = vunpack.c.l.b16 %v460
        %v520 = vunpack.c.h.b16 %v460
        %v521 = vunpack.c.l.b16 %v461
        %v522 = vunpack.c.h.b16 %v461
        %v523 = vunpack.c.l.b16 %v462
        %v524 = vunpack.c.h.b16 %v462
        %v525 = vunpack.c.l.b16 %v463
        %v526 = vunpack.c.h.b16 %v463
        %v527 = vunpack.c.l.b16 %v464
        %v528 = vunpack.c.h.b16 %v464
        %v529 = vunpack.c.l.b16 %v465
        %v530 = vunpack.c.h.b16 %v465
        %v531 = vunpack.c.l.b16 %v466
        %v532 = vunpack.c.h.b16 %v466
        %v533 = vunpack.c.l.b16 %v467
        %v534 = vunpack.c.h.b16 %v467
        %v535 = vunpack.c.l.b16 %v468
        %v536 = vunpack.c.h.b16 %v468
        %v537 = vunpack.c.l.b16 %v469
        %v538 = vunpack.c.h.b16 %v469
        %v539 = vunpack.c.l.b16 %v470
        %v540 = vunpack.c.h.b16 %v470
        %v541 = vpack.c.b16 %v513, %v509
        %v542 = vpack.c.b16 %v514, %v510
        %v543 = vpack.c.b16 %v515, %v511
        %v544 = vpack.c.b16 %v516, %v512
        %v545 = vpack.c.b16 %v521, %v517
        %v546 = vpack.c.b16 %v522, %v518
        %v547 = vpack.c.b16 %v523, %v519
        %v548 = vpack.c.b16 %v524, %v520
        %v549 = vpack.c.b16 %v529, %v525
        %v550 = vpack.c.b16 %v530, %v526
        %v551 = vpack.c.b16 %v531, %v527
        %v552 = vpack.c.b16 %v532, %v528
        %v553 = vpack.c.b16 %v537, %v533
        %v554 = vpack.c.b16 %v538, %v534
        %v555 = vpack.c.b16 %v539, %v535
        %v556 = vpack.c.b16 %v540, %v536
        %vm573 = vcmask 523264
        %v575 = vsel %vm573, %v447, 0
        %v578 = vsel %vm573, %v448, 0
        %v581 = vsel %vm573, %v449, 0
        %v584 = vsel %vm573, %v450, 0
        %v587 = vsel %vm573, %v451, 0
        %v590 = vsel %vm573, %v452, 0
        %v593 = vsel %vm573, %v453, 0
        %v596 = vsel %vm573, %v454, 0
        %598 = vmatprep.subr.bf16.mxu0 %v542
        %599 = vmatpush1.bf16.msra.mxu0 %v541
        %600 = vmatprep.subr.bf16.mxu0 %v546
        %601 = vmatpush1.bf16.msra.mxu0 %v545
        %602 = vmatprep.subr.bf16.mxu0 %v550
        %603 = vmatpush1.bf16.msra.mxu0 %v549
        %604 = vmatprep.subr.bf16.mxu0 %v554
        %605 = vmatpush1.bf16.msra.mxu0 %v553
        %606 = vmatprep.subr.bf16.mxu0 0
        %607 = vmatpush1.bf16.msra.mxu0 0
        %608 = vmatprep.subr.bf16.mxu0 0
        %609 = vmatpush1.bf16.msra.mxu0 0
        %610 = vmatprep.subr.bf16.mxu0 0
        %611 = vmatpush1.bf16.msra.mxu0 0
        %612 = vmatprep.subr.bf16.mxu0 0
        %613 = vmatpush1.bf16.msra.mxu0 0
        %614 = vmatprep.subr.bf16.mxu0 0
        %615 = vmatpush1.bf16.msra.mxu0 0
        %616 = vmatprep.subr.bf16.mxu0 0
        %617 = vmatpush1.bf16.msra.mxu0 0
        %618 = vmatprep.subr.bf16.mxu0 0
        %619 = vmatpush1.bf16.msra.mxu0 0
        %620 = vmatprep.subr.bf16.mxu0 0
        %621 = vmatpush1.bf16.msra.mxu0 0
        %622 = vmatprep.subr.bf16.mxu0 0
        %623 = vmatpush1.bf16.msra.mxu0 0
        %624 = vmatprep.subr.bf16.mxu0 0
        %625 = vmatpush1.bf16.msra.mxu0 0
        %626 = vmatprep.subr.bf16.mxu0 0
        %627 = vmatpush1.bf16.msra.mxu0 0
        %628 = vmatprep.subr.bf16.mxu0 0
        %629 = vmatpush1.bf16.msra.mxu0 0
        %630 = vmatprep.mubr.bf16.mxu0 0
        %631 = vmatmul.mubr.bf16.gmra.mrb[0].mxu0 %v575
        %v632 = vpop.f32.mrb[0].mxu0
        %v633 = vadd.f32 %v476, %v632
        %v634 = vpop.f32.mrb[0].mxu0
        %v635 = vadd.f32 %v480, %v634
        %v636 = vpop.f32.mrb[0].mxu0
        %v637 = vadd.f32 %v476, %v636
        %v638 = vpop.f32.mrb[0].mxu0
        %v639 = vadd.f32 %v480, %v638
        %640 = vmatprep.mubr.bf16.mxu0 0
        %641 = vmatmul.mubr.bf16.gmra.mrb[0].mxu0 %v578
        %v642 = vpop.f32.mrb[0].mxu0
        %v643 = vadd.f32 %v476, %v642
        %v644 = vpop.f32.mrb[0].mxu0
        %v645 = vadd.f32 %v480, %v644
        %v646 = vpop.f32.mrb[0].mxu0
        %v647 = vadd.f32 %v476, %v646
        %v648 = vpop.f32.mrb[0].mxu0
        %v649 = vadd.f32 %v480, %v648
        %650 = vmatprep.mubr.bf16.mxu0 0
        %651 = vmatmul.mubr.bf16.gmra.mrb[0].mxu0 %v581
        %v652 = vpop.f32.mrb[0].mxu0
        %v653 = vadd.f32 %v476, %v652
        %v654 = vpop.f32.mrb[0].mxu0
        %v655 = vadd.f32 %v480, %v654
        %v656 = vpop.f32.mrb[0].mxu0
        %v657 = vadd.f32 %v476, %v656
        %v658 = vpop.f32.mrb[0].mxu0
        %v659 = vadd.f32 %v480, %v658
        %660 = vmatprep.mubr.bf16.mxu0 0
        %661 = vmatmul.mubr.bf16.gmra.mrb[0].mxu0 %v584
        %v662 = vpop.f32.mrb[0].mxu0
        %v663 = vadd.f32 %v476, %v662
        %v664 = vpop.f32.mrb[0].mxu0
        %v665 = vadd.f32 %v480, %v664
        %v666 = vpop.f32.mrb[0].mxu0
        %v667 = vadd.f32 %v476, %v666
        %v668 = vpop.f32.mrb[0].mxu0
        %v669 = vadd.f32 %v480, %v668
        %670 = vmatprep.mubr.bf16.mxu0 0
        %671 = vmatmul.mubr.bf16.gmra.mrb[0].mxu0 %v587
        %v672 = vpop.f32.mrb[0].mxu0
        %v673 = vadd.f32 %v476, %v672
        %v674 = vpop.f32.mrb[0].mxu0
        %v675 = vadd.f32 %v480, %v674
        %v676 = vpop.f32.mrb[0].mxu0
        %v677 = vadd.f32 %v476, %v676
        %v678 = vpop.f32.mrb[0].mxu0
        %v679 = vadd.f32 %v480, %v678
        %680 = vmatprep.mubr.bf16.mxu0 0
        %681 = vmatmul.mubr.bf16.gmra.mrb[0].mxu0 %v590
        %v682 = vpop.f32.mrb[0].mxu0
        %v683 = vadd.f32 %v476, %v682
        %v684 = vpop.f32.mrb[0].mxu0
        %v685 = vadd.f32 %v480, %v684
        %v686 = vpop.f32.mrb[0].mxu0
        %v687 = vadd.f32 %v476, %v686
        %v688 = vpop.f32.mrb[0].mxu0
        %v689 = vadd.f32 %v480, %v688
        %690 = vmatprep.mubr.bf16.mxu0 0
        %691 = vmatmul.mubr.bf16.gmra.mrb[0].mxu0 %v593
        %v692 = vpop.f32.mrb[0].mxu0
        %v693 = vadd.f32 %v476, %v692
        %v694 = vpop.f32.mrb[0].mxu0
        %v695 = vadd.f32 %v480, %v694
        %v696 = vpop.f32.mrb[0].mxu0
        %v697 = vadd.f32 %v476, %v696
        %v698 = vpop.f32.mrb[0].mxu0
        %v699 = vadd.f32 %v480, %v698
        %700 = vmatprep.mubr.bf16.mxu0 0
        %701 = vmatmul.mubr.bf16.gmra.mrb[0].mxu0 %v596
        %v702 = vpop.f32.mrb[0].mxu0
        %v703 = vadd.f32 %v476, %v702
        %v704 = vpop.f32.mrb[0].mxu0
        %v705 = vadd.f32 %v480, %v704
        %v706 = vpop.f32.mrb[0].mxu0
        %v707 = vadd.f32 %v476, %v706
        %v708 = vpop.f32.mrb[0].mxu0
        %v709 = vadd.f32 %v480, %v708
        %710 = vdwg.mxu0
        %711 = vmatprep.subr.bf16.mxu0 %v544
        %712 = vmatpush1.bf16.msra.mxu0 %v543
        %713 = vmatprep.subr.bf16.mxu0 %v548
        %714 = vmatpush1.bf16.msra.mxu0 %v547
        %715 = vmatprep.subr.bf16.mxu0 %v552
        %716 = vmatpush1.bf16.msra.mxu0 %v551
        %717 = vmatprep.subr.bf16.mxu0 %v556
        %718 = vmatpush1.bf16.msra.mxu0 %v555
        %719 = vmatprep.subr.bf16.mxu0 0
        %720 = vmatpush1.bf16.msra.mxu0 0
        %721 = vmatprep.subr.bf16.mxu0 0
        %722 = vmatpush1.bf16.msra.mxu0 0
        %723 = vmatprep.subr.bf16.mxu0 0
        %724 = vmatpush1.bf16.msra.mxu0 0
        %725 = vmatprep.subr.bf16.mxu0 0
        %726 = vmatpush1.bf16.msra.mxu0 0
        %727 = vmatprep.subr.bf16.mxu0 0
        %728 = vmatpush1.bf16.msra.mxu0 0
        %729 = vmatprep.subr.bf16.mxu0 0
        %730 = vmatpush1.bf16.msra.mxu0 0
        %731 = vmatprep.subr.bf16.mxu0 0
        %732 = vmatpush1.bf16.msra.mxu0 0
        %733 = vmatprep.subr.bf16.mxu0 0
        %734 = vmatpush1.bf16.msra.mxu0 0
        %735 = vmatprep.subr.bf16.mxu0 0
        %736 = vmatpush1.bf16.msra.mxu0 0
        %737 = vmatprep.subr.bf16.mxu0 0
        %738 = vmatpush1.bf16.msra.mxu0 0
        %739 = vmatprep.subr.bf16.mxu0 0
        %740 = vmatpush1.bf16.msra.mxu0 0
        %741 = vmatprep.subr.bf16.mxu0 0
        %742 = vmatpush1.bf16.msra.mxu0 0
        %743 = vmatprep.mubr.bf16.mxu0 0
        %744 = vmatmul.mubr.bf16.gmra.mrb[0].mxu0 %v575
        %v745 = vpop.f32.mrb[0].mxu0
        %v746 = vadd.f32 %v484, %v745
        %v747 = vpop.f32.mrb[0].mxu0
        %v748 = vadd.f32 %v488, %v747
        %v749 = vpop.f32.mrb[0].mxu0
        %v750 = vadd.f32 %v484, %v749
        %v751 = vpop.f32.mrb[0].mxu0
        %v752 = vadd.f32 %v488, %v751
        %753 = vmatprep.mubr.bf16.mxu0 0
        %754 = vmatmul.mubr.bf16.gmra.mrb[0].mxu0 %v578
        %v755 = vpop.f32.mrb[0].mxu0
        %v756 = vadd.f32 %v484, %v755
        %v757 = vpop.f32.mrb[0].mxu0
        %v758 = vadd.f32 %v488, %v757
        %v759 = vpop.f32.mrb[0].mxu0
        %v760 = vadd.f32 %v484, %v759
        %v761 = vpop.f32.mrb[0].mxu0
        %v762 = vadd.f32 %v488, %v761
        %763 = vmatprep.mubr.bf16.mxu0 0
        %764 = vmatmul.mubr.bf16.gmra.mrb[0].mxu0 %v581
        %v765 = vpop.f32.mrb[0].mxu0
        %v766 = vadd.f32 %v484, %v765
        %v767 = vpop.f32.mrb[0].mxu0
        %v768 = vadd.f32 %v488, %v767
        %v769 = vpop.f32.mrb[0].mxu0
        %v770 = vadd.f32 %v484, %v769
        %v771 = vpop.f32.mrb[0].mxu0
        %v772 = vadd.f32 %v488, %v771
        %773 = vmatprep.mubr.bf16.mxu0 0
        %774 = vmatmul.mubr.bf16.gmra.mrb[0].mxu0 %v584
        %v775 = vpop.f32.mrb[0].mxu0
        %v776 = vadd.f32 %v484, %v775
        %v777 = vpop.f32.mrb[0].mxu0
        %v778 = vadd.f32 %v488, %v777
        %v779 = vpop.f32.mrb[0].mxu0
        %v780 = vadd.f32 %v484, %v779
        %v781 = vpop.f32.mrb[0].mxu0
        %v782 = vadd.f32 %v488, %v781
        %783 = vmatprep.mubr.bf16.mxu0 0
        %784 = vmatmul.mubr.bf16.gmra.mrb[0].mxu0 %v587
        %v785 = vpop.f32.mrb[0].mxu0
        %v786 = vadd.f32 %v484, %v785
        %v787 = vpop.f32.mrb[0].mxu0
        %v788 = vadd.f32 %v488, %v787
        %v789 = vpop.f32.mrb[0].mxu0
        %v790 = vadd.f32 %v484, %v789
        %v791 = vpop.f32.mrb[0].mxu0
        %v792 = vadd.f32 %v488, %v791
        %793 = vmatprep.mubr.bf16.mxu0 0
        %794 = vmatmul.mubr.bf16.gmra.mrb[0].mxu0 %v590
        %v795 = vpop.f32.mrb[0].mxu0
        %v796 = vadd.f32 %v484, %v795
        %v797 = vpop.f32.mrb[0].mxu0
        %v798 = vadd.f32 %v488, %v797
        %v799 = vpop.f32.mrb[0].mxu0
        %v800 = vadd.f32 %v484, %v799
        %v801 = vpop.f32.mrb[0].mxu0
        %v802 = vadd.f32 %v488, %v801
        %803 = vmatprep.mubr.bf16.mxu0 0
        %804 = vmatmul.mubr.bf16.gmra.mrb[0].mxu0 %v593
        %v805 = vpop.f32.mrb[0].mxu0
        %v806 = vadd.f32 %v484, %v805
        %v807 = vpop.f32.mrb[0].mxu0
        %v808 = vadd.f32 %v488, %v807
        %v809 = vpop.f32.mrb[0].mxu0
        %v810 = vadd.f32 %v484, %v809
        %v811 = vpop.f32.mrb[0].mxu0
        %v812 = vadd.f32 %v488, %v811
        %813 = vmatprep.mubr.bf16.mxu0 0
        %814 = vmatmul.mubr.bf16.gmra.mrb[0].mxu0 %v596
        %v815 = vpop.f32.mrb[0].mxu0
        %v816 = vadd.f32 %v484, %v815
        %v817 = vpop.f32.mrb[0].mxu0
        %v818 = vadd.f32 %v488, %v817
        %v819 = vpop.f32.mrb[0].mxu0
        %v820 = vadd.f32 %v484, %v819
        %v821 = vpop.f32.mrb[0].mxu0
        %v822 = vadd.f32 %v488, %v821
        %823 = vdwg.mxu0
        %vm824 = vcmp.gt.f32.partialorder %v633, 0.0
        %vm825 = vcmp.gt.f32.partialorder %v635, 0.0
        %vm826 = vcmp.gt.f32.partialorder %v746, 0.0
        %vm827 = vcmp.gt.f32.partialorder %v748, 0.0
        %vm828 = vcmp.gt.f32.partialorder %v637, 0.0
        %vm829 = vcmp.gt.f32.partialorder %v639, 0.0
        %vm830 = vcmp.gt.f32.partialorder %v750, 0.0
        %vm831 = vcmp.gt.f32.partialorder %v752, 0.0
        %vm832 = vcmp.gt.f32.partialorder %v643, 0.0
        %vm833 = vcmp.gt.f32.partialorder %v645, 0.0
        %vm834 = vcmp.gt.f32.partialorder %v756, 0.0
        %vm835 = vcmp.gt.f32.partialorder %v758, 0.0
        %vm836 = vcmp.gt.f32.partialorder %v647, 0.0
        %vm837 = vcmp.gt.f32.partialorder %v649, 0.0
        %vm838 = vcmp.gt.f32.partialorder %v760, 0.0
        %vm839 = vcmp.gt.f32.partialorder %v762, 0.0
        %vm840 = vcmp.gt.f32.partialorder %v653, 0.0
        %vm841 = vcmp.gt.f32.partialorder %v655, 0.0
        %vm842 = vcmp.gt.f32.partialorder %v766, 0.0
        %vm843 = vcmp.gt.f32.partialorder %v768, 0.0
        %vm844 = vcmp.gt.f32.partialorder %v657, 0.0
        %vm845 = vcmp.gt.f32.partialorder %v659, 0.0
        %vm846 = vcmp.gt.f32.partialorder %v770, 0.0
        %vm847 = vcmp.gt.f32.partialorder %v772, 0.0
        %vm848 = vcmp.gt.f32.partialorder %v663, 0.0
        %vm849 = vcmp.gt.f32.partialorder %v665, 0.0
        %vm850 = vcmp.gt.f32.partialorder %v776, 0.0
        %vm851 = vcmp.gt.f32.partialorder %v778, 0.0
        %vm852 = vcmp.gt.f32.partialorder %v667, 0.0
        %vm853 = vcmp.gt.f32.partialorder %v669, 0.0
        %vm854 = vcmp.gt.f32.partialorder %v780, 0.0
        %vm855 = vcmp.gt.f32.partialorder %v782, 0.0
        %vm856 = vcmp.gt.f32.partialorder %v673, 0.0
        %vm857 = vcmp.gt.f32.partialorder %v675, 0.0
        %vm858 = vcmp.gt.f32.partialorder %v786, 0.0
        %vm859 = vcmp.gt.f32.partialorder %v788, 0.0
        %vm860 = vcmp.gt.f32.partialorder %v677, 0.0
        %vm861 = vcmp.gt.f32.partialorder %v679, 0.0
        %vm862 = vcmp.gt.f32.partialorder %v790, 0.0
        %vm863 = vcmp.gt.f32.partialorder %v792, 0.0
        %vm864 = vcmp.gt.f32.partialorder %v683, 0.0
        %vm865 = vcmp.gt.f32.partialorder %v685, 0.0
        %vm866 = vcmp.gt.f32.partialorder %v796, 0.0
        %vm867 = vcmp.gt.f32.partialorder %v798, 0.0
        %vm868 = vcmp.gt.f32.partialorder %v687, 0.0
        %vm869 = vcmp.gt.f32.partialorder %v689, 0.0
        %vm870 = vcmp.gt.f32.partialorder %v800, 0.0
        %vm871 = vcmp.gt.f32.partialorder %v802, 0.0
        %vm872 = vcmp.gt.f32.partialorder %v693, 0.0
        %vm873 = vcmp.gt.f32.partialorder %v695, 0.0
        %vm874 = vcmp.gt.f32.partialorder %v806, 0.0
        %vm875 = vcmp.gt.f32.partialorder %v808, 0.0
        %vm876 = vcmp.gt.f32.partialorder %v697, 0.0
        %vm877 = vcmp.gt.f32.partialorder %v699, 0.0
        %vm878 = vcmp.gt.f32.partialorder %v810, 0.0
        %vm879 = vcmp.gt.f32.partialorder %v812, 0.0
        %vm880 = vcmp.gt.f32.partialorder %v703, 0.0
        %vm881 = vcmp.gt.f32.partialorder %v705, 0.0
        %vm882 = vcmp.gt.f32.partialorder %v816, 0.0
        %vm883 = vcmp.gt.f32.partialorder %v818, 0.0
        %vm884 = vcmp.gt.f32.partialorder %v707, 0.0
        %vm885 = vcmp.gt.f32.partialorder %v709, 0.0
        %vm886 = vcmp.gt.f32.partialorder %v820, 0.0
        %vm887 = vcmp.gt.f32.partialorder %v822, 0.0
        %v888 = vmul.f32 %v633, 0.2
        %v889 = vmul.f32 %v635, 0.2
        %v890 = vmul.f32 %v746, 0.2
        %v891 = vmul.f32 %v748, 0.2
        %v892 = vmul.f32 %v637, 0.2
        %v893 = vmul.f32 %v639, 0.2
        %v894 = vmul.f32 %v750, 0.2
        %v895 = vmul.f32 %v752, 0.2
        %v896 = vmul.f32 %v643, 0.2
        %v897 = vmul.f32 %v645, 0.2
        %v898 = vmul.f32 %v756, 0.2
        %v899 = vmul.f32 %v758, 0.2
        %v900 = vmul.f32 %v647, 0.2
        %v901 = vmul.f32 %v649, 0.2
        %v902 = vmul.f32 %v760, 0.2
        %v903 = vmul.f32 %v762, 0.2
        %v904 = vmul.f32 %v653, 0.2
        %v905 = vmul.f32 %v655, 0.2
        %v906 = vmul.f32 %v766, 0.2
        %v907 = vmul.f32 %v768, 0.2
        %v908 = vmul.f32 %v657, 0.2
        %v909 = vmul.f32 %v659, 0.2
        %v910 = vmul.f32 %v770, 0.2
        %v911 = vmul.f32 %v772, 0.2
        %v912 = vmul.f32 %v663, 0.2
        %v913 = vmul.f32 %v665, 0.2
        %v914 = vmul.f32 %v776, 0.2
        %v915 = vmul.f32 %v778, 0.2
        %v916 = vmul.f32 %v667, 0.2
        %v917 = vmul.f32 %v669, 0.2
        %v918 = vmul.f32 %v780, 0.2
        %v919 = vmul.f32 %v782, 0.2
        %v920 = vmul.f32 %v673, 0.2
        %v921 = vmul.f32 %v675, 0.2
        %v922 = vmul.f32 %v786, 0.2
        %v923 = vmul.f32 %v788, 0.2
        %v924 = vmul.f32 %v677, 0.2
        %v925 = vmul.f32 %v679, 0.2
        %v926 = vmul.f32 %v790, 0.2
        %v927 = vmul.f32 %v792, 0.2
        %v928 = vmul.f32 %v683, 0.2
        %v929 = vmul.f32 %v685, 0.2
        %v930 = vmul.f32 %v796, 0.2
        %v931 = vmul.f32 %v798, 0.2
        %v932 = vmul.f32 %v687, 0.2
        %v933 = vmul.f32 %v689, 0.2
        %v934 = vmul.f32 %v800, 0.2
        %v935 = vmul.f32 %v802, 0.2
        %v936 = vmul.f32 %v693, 0.2
        %v937 = vmul.f32 %v695, 0.2
        %v938 = vmul.f32 %v806, 0.2
        %v939 = vmul.f32 %v808, 0.2
        %v940 = vmul.f32 %v697, 0.2
        %v941 = vmul.f32 %v699, 0.2
        %v942 = vmul.f32 %v810, 0.2
        %v943 = vmul.f32 %v812, 0.2
        %v944 = vmul.f32 %v703, 0.2
        %v945 = vmul.f32 %v705, 0.2
        %v946 = vmul.f32 %v816, 0.2
        %v947 = vmul.f32 %v818, 0.2
        %v948 = vmul.f32 %v707, 0.2
        %v949 = vmul.f32 %v709, 0.2
        %v950 = vmul.f32 %v820, 0.2
        %v951 = vmul.f32 %v822, 0.2
        %v952 = vsel %vm824, %v633, %v888
        %v953 = vsel %vm825, %v635, %v889
        %v954 = vsel %vm826, %v746, %v890
        %v955 = vsel %vm827, %v748, %v891
        %v956 = vsel %vm828, %v637, %v892
        %v957 = vsel %vm829, %v639, %v893
        %v958 = vsel %vm830, %v750, %v894
        %v959 = vsel %vm831, %v752, %v895
        %v960 = vsel %vm832, %v643, %v896
        %v961 = vsel %vm833, %v645, %v897
        %v962 = vsel %vm834, %v756, %v898
        %v963 = vsel %vm835, %v758, %v899
        %v964 = vsel %vm836, %v647, %v900
        %v965 = vsel %vm837, %v649, %v901
        %v966 = vsel %vm838, %v760, %v902
        %v967 = vsel %vm839, %v762, %v903
        %v968 = vsel %vm840, %v653, %v904
        %v969 = vsel %vm841, %v655, %v905
        %v970 = vsel %vm842, %v766, %v906
        %v971 = vsel %vm843, %v768, %v907
        %v972 = vsel %vm844, %v657, %v908
        %v973 = vsel %vm845, %v659, %v909
        %v974 = vsel %vm846, %v770, %v910
        %v975 = vsel %vm847, %v772, %v911
        %v976 = vsel %vm848, %v663, %v912
        %v977 = vsel %vm849, %v665, %v913
        %v978 = vsel %vm850, %v776, %v914
        %v979 = vsel %vm851, %v778, %v915
        %v980 = vsel %vm852, %v667, %v916
        %v981 = vsel %vm853, %v669, %v917
        %v982 = vsel %vm854, %v780, %v918
        %v983 = vsel %vm855, %v782, %v919
        %v984 = vsel %vm856, %v673, %v920
        %v985 = vsel %vm857, %v675, %v921
        %v986 = vsel %vm858, %v786, %v922
        %v987 = vsel %vm859, %v788, %v923
        %v988 = vsel %vm860, %v677, %v924
        %v989 = vsel %vm861, %v679, %v925
        %v990 = vsel %vm862, %v790, %v926
        %v991 = vsel %vm863, %v792, %v927
        %v992 = vsel %vm864, %v683, %v928
        %v993 = vsel %vm865, %v685, %v929
        %v994 = vsel %vm866, %v796, %v930
        %v995 = vsel %vm867, %v798, %v931
        %v996 = vsel %vm868, %v687, %v932
        %v997 = vsel %vm869, %v689, %v933
        %v998 = vsel %vm870, %v800, %v934
        %v999 = vsel %vm871, %v802, %v935
        %v1000 = vsel %vm872, %v693, %v936
        %v1001 = vsel %vm873, %v695, %v937
        %v1002 = vsel %vm874, %v806, %v938
        %v1003 = vsel %vm875, %v808, %v939
        %v1004 = vsel %vm876, %v697, %v940
        %v1005 = vsel %vm877, %v699, %v941
        %v1006 = vsel %vm878, %v810, %v942
        %v1007 = vsel %vm879, %v812, %v943
        %v1008 = vsel %vm880, %v703, %v944
        %v1009 = vsel %vm881, %v705, %v945
        %v1010 = vsel %vm882, %v816, %v946
        %v1011 = vsel %vm883, %v818, %v947
        %v1012 = vsel %vm884, %v707, %v948
        %v1013 = vsel %vm885, %v709, %v949
        %v1014 = vsel %vm886, %v820, %v950
        %v1015 = vsel %vm887, %v822, %v951
        %v1016 = vpack.c.bf16 %v956, %v952
        %v1017 = vpack.c.bf16 %v957, %v953
        %v1018 = vpack.c.bf16 %v958, %v954
        %v1019 = vpack.c.bf16 %v959, %v955
        %v1020 = vpack.c.bf16 %v964, %v960
        %v1021 = vpack.c.bf16 %v965, %v961
        %v1022 = vpack.c.bf16 %v966, %v962
        %v1023 = vpack.c.bf16 %v967, %v963
        %v1024 = vpack.c.bf16 %v972, %v968
        %v1025 = vpack.c.bf16 %v973, %v969
        %v1026 = vpack.c.bf16 %v974, %v970
        %v1027 = vpack.c.bf16 %v975, %v971
        %v1028 = vpack.c.bf16 %v980, %v976
        %v1029 = vpack.c.bf16 %v981, %v977
        %v1030 = vpack.c.bf16 %v982, %v978
        %v1031 = vpack.c.bf16 %v983, %v979
        %v1032 = vpack.c.bf16 %v988, %v984
        %v1033 = vpack.c.bf16 %v989, %v985
        %v1034 = vpack.c.bf16 %v990, %v986
        %v1035 = vpack.c.bf16 %v991, %v987
        %v1036 = vpack.c.bf16 %v996, %v992
        %v1037 = vpack.c.bf16 %v997, %v993
        %v1038 = vpack.c.bf16 %v998, %v994
        %v1039 = vpack.c.bf16 %v999, %v995
        %v1040 = vpack.c.bf16 %v1004, %v1000
        %v1041 = vpack.c.bf16 %v1005, %v1001
        %v1042 = vpack.c.bf16 %v1006, %v1002
        %v1043 = vpack.c.bf16 %v1007, %v1003
        %v1044 = vpack.c.bf16 %v1012, %v1008
        %v1045 = vpack.c.bf16 %v1013, %v1009
        %v1046 = vpack.c.bf16 %v1014, %v1010
        %v1047 = vpack.c.bf16 %v1015, %v1011
        %v1048 = vld [vmem:[%s3] sm:$0xf]
        %v1049 = vld [vmem:[%s3 + $0x4] sm:$0xf]
        %v1050 = vld [vmem:[%s3 + $0x8] sm:$0xf]
        %v1051 = vld [vmem:[%s3 + $0xc] sm:$0xf]
        %v1052 = vld [vmem:[%s3 + $0x10] sm:$0xf]
        %v1053 = vld [vmem:[%s3 + $0x14] sm:$0xf]
        %v1054 = vld [vmem:[%s3 + $0x18] sm:$0xf]
        %v1055 = vld [vmem:[%s3 + $0x1c] sm:$0xf]
        %v1056 = vld [vmem:[%s3 + $0x20] sm:$0xf]
        %v1057 = vld [vmem:[%s3 + $0x24] sm:$0xf]
        %v1058 = vld [vmem:[%s3 + $0x28] sm:$0xf]
        %v1059 = vld [vmem:[%s3 + $0x2c] sm:$0xf]
        %v1060 = vld [vmem:[%s3 + $0x30] sm:$0xf]
        %v1061 = vld [vmem:[%s3 + $0x34] sm:$0xf]
        %v1062 = vld [vmem:[%s3 + $0x38] sm:$0xf]
        %v1063 = vld [vmem:[%s3 + $0x3c] sm:$0xf]
        %v1064 = vld [vmem:[%s3 + $0x40] sm:$0xf]
        %v1065 = vld [vmem:[%s3 + $0x44] sm:$0xf]
        %v1066 = vld [vmem:[%s3 + $0x48] sm:$0xf]
        %v1067 = vld [vmem:[%s3 + $0x4c] sm:$0xf]
        %v1068 = vld [vmem:[%s3 + $0x50] sm:$0xf]
        %v1069 = vld [vmem:[%s3 + $0x54] sm:$0xf]
        %v1070 = vld [vmem:[%s3 + $0x58] sm:$0xf]
        %v1071 = vld [vmem:[%s3 + $0x5c] sm:$0xf]
        %v1072 = vld [vmem:[%s3 + $0x60] sm:$0xf]
        %v1073 = vld [vmem:[%s3 + $0x64] sm:$0xf]
        %v1074 = vld [vmem:[%s3 + $0x68] sm:$0xf]
        %v1075 = vld [vmem:[%s3 + $0x6c] sm:$0xf]
        %v1076 = vld [vmem:[%s3 + $0x70] sm:$0xf]
        %v1077 = vld [vmem:[%s3 + $0x74] sm:$0xf]
        %v1078 = vld [vmem:[%s3 + $0x78] sm:$0xf]
        %v1079 = vld [vmem:[%s3 + $0x7c] sm:$0xf]
        %v1080 = vld [vmem:[%s3 + $0x80] sm:$0xf]
        %v1081 = vld [vmem:[%s3 + $0x84] sm:$0xf]
        %v1082 = vld [vmem:[%s3 + $0x88] sm:$0xf]
        %v1083 = vld [vmem:[%s3 + $0x8c] sm:$0xf]
        %v1084 = vld [vmem:[%s3 + $0x90] sm:$0xf]
        %v1085 = vld [vmem:[%s3 + $0x94] sm:$0xf]
        %v1086 = vld [vmem:[%s3 + $0x98] sm:$0xf]
        %v1087 = vld [vmem:[%s3 + $0x9c] sm:$0xf]
        %v1088 = vld [vmem:[%s3 + $0xa0] sm:$0xf]
        %v1089 = vld [vmem:[%s3 + $0xa4] sm:$0xf]
        %v1090 = vld [vmem:[%s3 + $0xa8] sm:$0xf]
        %v1091 = vld [vmem:[%s3 + $0xac] sm:$0xf]
        %v1092 = vld [vmem:[%s3 + $0xb0] sm:$0xf]
        %v1093 = vld [vmem:[%s3 + $0xb4] sm:$0xf]
        %v1094 = vld [vmem:[%s3 + $0xb8] sm:$0xf]
        %v1095 = vld [vmem:[%s3 + $0xbc] sm:$0xf]
        %v1096 = vld [vmem:[%s3 + $0xc0] sm:$0xf]
        %v1097 = vld [vmem:[%s3 + $0xc4] sm:$0xf]
        %v1098 = vld [vmem:[%s3 + $0xc8] sm:$0xf]
        %v1099 = vld [vmem:[%s3 + $0xcc] sm:$0xf]
        %v1100 = vld [vmem:[%s3 + $0xd0] sm:$0xf]
        %v1101 = vld [vmem:[%s3 + $0xd4] sm:$0xf]
        %v1102 = vld [vmem:[%s3 + $0xd8] sm:$0xf]
        %v1103 = vld [vmem:[%s3 + $0xdc] sm:$0xf]
        %v1104 = vld [vmem:[%s3 + $0xe0] sm:$0xf]
        %v1105 = vld [vmem:[%s3 + $0xe4] sm:$0xf]
        %v1106 = vld [vmem:[%s3 + $0xe8] sm:$0xf]
        %v1107 = vld [vmem:[%s3 + $0xec] sm:$0xf]
        %v1108 = vld [vmem:[%s3 + $0xf0] sm:$0xf]
        %v1109 = vld [vmem:[%s3 + $0xf4] sm:$0xf]
        %v1110 = vld [vmem:[%s3 + $0xf8] sm:$0xf]
        %v1111 = vld [vmem:[%s3 + $0xfc] sm:$0xf]
        %v1176 = vunpack.c.l.b16 %v1048
        %v1177 = vunpack.c.l.b16 %v1049
        %v1178 = vunpack.c.l.b16 %v1050
        %v1179 = vunpack.c.l.b16 %v1051
        %v1180 = vunpack.c.l.b16 %v1052
        %v1181 = vunpack.c.l.b16 %v1053
        %v1182 = vunpack.c.l.b16 %v1054
        %v1183 = vunpack.c.l.b16 %v1055
        %v1184 = vunpack.c.l.b16 %v1056
        %v1185 = vunpack.c.l.b16 %v1057
        %v1186 = vunpack.c.l.b16 %v1058
        %v1187 = vunpack.c.l.b16 %v1059
        %v1188 = vunpack.c.l.b16 %v1060
        %v1189 = vunpack.c.l.b16 %v1061
        %v1190 = vunpack.c.l.b16 %v1062
        %v1191 = vunpack.c.l.b16 %v1063
        %v1192 = vunpack.c.l.b16 %v1064
        %v1193 = vunpack.c.l.b16 %v1065
        %v1194 = vunpack.c.l.b16 %v1066
        %v1195 = vunpack.c.l.b16 %v1067
        %v1196 = vunpack.c.l.b16 %v1068
        %v1197 = vunpack.c.l.b16 %v1069
        %v1198 = vunpack.c.l.b16 %v1070
        %v1199 = vunpack.c.l.b16 %v1071
        %v1200 = vunpack.c.l.b16 %v1072
        %v1201 = vunpack.c.l.b16 %v1073
        %v1202 = vunpack.c.l.b16 %v1074
        %v1203 = vunpack.c.l.b16 %v1075
        %v1204 = vunpack.c.l.b16 %v1076
        %v1205 = vunpack.c.l.b16 %v1077
        %v1206 = vunpack.c.l.b16 %v1078
        %v1207 = vunpack.c.l.b16 %v1079
        %v1208 = vunpack.c.l.b16 %v1080
        %v1209 = vunpack.c.l.b16 %v1081
        %v1210 = vunpack.c.l.b16 %v1082
        %v1211 = vunpack.c.l.b16 %v1083
        %v1212 = vunpack.c.l.b16 %v1084
        %v1213 = vunpack.c.l.b16 %v1085
        %v1214 = vunpack.c.l.b16 %v1086
        %v1215 = vunpack.c.l.b16 %v1087
        %v1216 = vunpack.c.l.b16 %v1088
        %v1217 = vunpack.c.l.b16 %v1089
        %v1218 = vunpack.c.l.b16 %v1090
        %v1219 = vunpack.c.l.b16 %v1091
        %v1220 = vunpack.c.l.b16 %v1092
        %v1221 = vunpack.c.l.b16 %v1093
        %v1222 = vunpack.c.l.b16 %v1094
        %v1223 = vunpack.c.l.b16 %v1095
        %v1224 = vunpack.c.l.b16 %v1096
        %v1225 = vunpack.c.l.b16 %v1097
        %v1226 = vunpack.c.l.b16 %v1098
        %v1227 = vunpack.c.l.b16 %v1099
        %v1228 = vunpack.c.l.b16 %v1100
        %v1229 = vunpack.c.l.b16 %v1101
        %v1230 = vunpack.c.l.b16 %v1102
        %v1231 = vunpack.c.l.b16 %v1103
        %v1232 = vunpack.c.l.b16 %v1104
        %v1233 = vunpack.c.l.b16 %v1105
        %v1234 = vunpack.c.l.b16 %v1106
        %v1235 = vunpack.c.l.b16 %v1107
        %v1236 = vunpack.c.l.b16 %v1108
        %v1237 = vunpack.c.l.b16 %v1109
        %v1238 = vunpack.c.l.b16 %v1110
        %v1239 = vunpack.c.l.b16 %v1111
        %v1240 = vpack.c.b16 %v1177, %v1176
        %v1241 = vpack.c.b16 %v1179, %v1178
        %v1242 = vpack.c.b16 %v1181, %v1180
        %v1243 = vpack.c.b16 %v1183, %v1182
        %v1244 = vpack.c.b16 %v1185, %v1184
        %v1245 = vpack.c.b16 %v1187, %v1186
        %v1246 = vpack.c.b16 %v1189, %v1188
        %v1247 = vpack.c.b16 %v1191, %v1190
        %v1248 = vpack.c.b16 %v1193, %v1192
        %v1249 = vpack.c.b16 %v1195, %v1194
        %v1250 = vpack.c.b16 %v1197, %v1196
        %v1251 = vpack.c.b16 %v1199, %v1198
        %v1252 = vpack.c.b16 %v1201, %v1200
        %v1253 = vpack.c.b16 %v1203, %v1202
        %v1254 = vpack.c.b16 %v1205, %v1204
        %v1255 = vpack.c.b16 %v1207, %v1206
        %v1256 = vpack.c.b16 %v1209, %v1208
        %v1257 = vpack.c.b16 %v1211, %v1210
        %v1258 = vpack.c.b16 %v1213, %v1212
        %v1259 = vpack.c.b16 %v1215, %v1214
        %v1260 = vpack.c.b16 %v1217, %v1216
        %v1261 = vpack.c.b16 %v1219, %v1218
        %v1262 = vpack.c.b16 %v1221, %v1220
        %v1263 = vpack.c.b16 %v1223, %v1222
        %v1264 = vpack.c.b16 %v1225, %v1224
        %v1265 = vpack.c.b16 %v1227, %v1226
        %v1266 = vpack.c.b16 %v1229, %v1228
        %v1267 = vpack.c.b16 %v1231, %v1230
        %v1268 = vpack.c.b16 %v1233, %v1232
        %v1269 = vpack.c.b16 %v1235, %v1234
        %v1270 = vpack.c.b16 %v1237, %v1236
        %v1271 = vpack.c.b16 %v1239, %v1238
        %1304 = vmatprep.subr.bf16.mxu0 0
        %1305 = vmatpush1.bf16.msra.mxu0 %v1240
        %1306 = vmatprep.subr.bf16.mxu0 0
        %1307 = vmatpush1.bf16.msra.mxu0 %v1241
        %1308 = vmatprep.subr.bf16.mxu0 0
        %1309 = vmatpush1.bf16.msra.mxu0 %v1242
        %1310 = vmatprep.subr.bf16.mxu0 0
        %1311 = vmatpush1.bf16.msra.mxu0 %v1243
        %1312 = vmatprep.subr.bf16.mxu0 0
        %1313 = vmatpush1.bf16.msra.mxu0 %v1244
        %1314 = vmatprep.subr.bf16.mxu0 0
        %1315 = vmatpush1.bf16.msra.mxu0 %v1245
        %1316 = vmatprep.subr.bf16.mxu0 0
        %1317 = vmatpush1.bf16.msra.mxu0 %v1246
        %1318 = vmatprep.subr.bf16.mxu0 0
        %1319 = vmatpush1.bf16.msra.mxu0 %v1247
        %1320 = vmatprep.subr.bf16.mxu0 0
        %1321 = vmatpush1.bf16.msra.mxu0 %v1248
        %1322 = vmatprep.subr.bf16.mxu0 0
        %1323 = vmatpush1.bf16.msra.mxu0 %v1249
        %1324 = vmatprep.subr.bf16.mxu0 0
        %1325 = vmatpush1.bf16.msra.mxu0 %v1250
        %1326 = vmatprep.subr.bf16.mxu0 0
        %1327 = vmatpush1.bf16.msra.mxu0 %v1251
        %1328 = vmatprep.subr.bf16.mxu0 0
        %1329 = vmatpush1.bf16.msra.mxu0 %v1252
        %1330 = vmatprep.subr.bf16.mxu0 0
        %1331 = vmatpush1.bf16.msra.mxu0 %v1253
        %1332 = vmatprep.subr.bf16.mxu0 0
        %1333 = vmatpush1.bf16.msra.mxu0 %v1254
        %1334 = vmatprep.subr.bf16.mxu0 0
        %1335 = vmatpush1.bf16.msra.mxu0 %v1255
        %1336 = vmatprep.mubr.bf16.mxu0 %v1017
        %1337 = vmatmul.mubr.bf16.gmra.mrb[0].mxu0 %v1016
        %v1338 = vpop.f32.mrb[0].mxu0
        %v1339 = vadd.f32 0.0, %v1338
        %v1340 = vpop.f32.mrb[0].mxu0
        %v1341 = vpop.f32.mrb[0].mxu0
        %v1342 = vadd.f32 0.0, %v1341
        %v1343 = vpop.f32.mrb[0].mxu0
        %1344 = vmatprep.mubr.bf16.mxu0 %v1021
        %1345 = vmatmul.mubr.bf16.gmra.mrb[0].mxu0 %v1020
        %v1346 = vpop.f32.mrb[0].mxu0
        %v1347 = vadd.f32 0.0, %v1346
        %v1348 = vpop.f32.mrb[0].mxu0
        %v1349 = vpop.f32.mrb[0].mxu0
        %v1350 = vadd.f32 0.0, %v1349
        %v1351 = vpop.f32.mrb[0].mxu0
        %1352 = vmatprep.mubr.bf16.mxu0 %v1025
        %1353 = vmatmul.mubr.bf16.gmra.mrb[0].mxu0 %v1024
        %v1354 = vpop.f32.mrb[0].mxu0
        %v1355 = vadd.f32 0.0, %v1354
        %v1356 = vpop.f32.mrb[0].mxu0
        %v1357 = vpop.f32.mrb[0].mxu0
        %v1358 = vadd.f32 0.0, %v1357
        %v1359 = vpop.f32.mrb[0].mxu0
        %1360 = vmatprep.mubr.bf16.mxu0 %v1029
        %1361 = vmatmul.mubr.bf16.gmra.mrb[0].mxu0 %v1028
        %v1362 = vpop.f32.mrb[0].mxu0
        %v1363 = vadd.f32 0.0, %v1362
        %v1364 = vpop.f32.mrb[0].mxu0
        %v1365 = vpop.f32.mrb[0].mxu0
        %v1366 = vadd.f32 0.0, %v1365
        %v1367 = vpop.f32.mrb[0].mxu0
        %1368 = vmatprep.mubr.bf16.mxu0 %v1033
        %1369 = vmatmul.mubr.bf16.gmra.mrb[0].mxu0 %v1032
        %v1370 = vpop.f32.mrb[0].mxu0
        %v1371 = vadd.f32 0.0, %v1370
        %v1372 = vpop.f32.mrb[0].mxu0
        %v1373 = vpop.f32.mrb[0].mxu0
        %v1374 = vadd.f32 0.0, %v1373
        %v1375 = vpop.f32.mrb[0].mxu0
        %1376 = vmatprep.mubr.bf16.mxu0 %v1037
        %1377 = vmatmul.mubr.bf16.gmra.mrb[0].mxu0 %v1036
        %v1378 = vpop.f32.mrb[0].mxu0
        %v1379 = vadd.f32 0.0, %v1378
        %v1380 = vpop.f32.mrb[0].mxu0
        %v1381 = vpop.f32.mrb[0].mxu0
        %v1382 = vadd.f32 0.0, %v1381
        %v1383 = vpop.f32.mrb[0].mxu0
        %1384 = vmatprep.mubr.bf16.mxu0 %v1041
        %1385 = vmatmul.mubr.bf16.gmra.mrb[0].mxu0 %v1040
        %v1386 = vpop.f32.mrb[0].mxu0
        %v1387 = vadd.f32 0.0, %v1386
        %v1388 = vpop.f32.mrb[0].mxu0
        %v1389 = vpop.f32.mrb[0].mxu0
        %v1390 = vadd.f32 0.0, %v1389
        %v1391 = vpop.f32.mrb[0].mxu0
        %1392 = vmatprep.mubr.bf16.mxu0 %v1045
        %1393 = vmatmul.mubr.bf16.gmra.mrb[0].mxu0 %v1044
        %v1394 = vpop.f32.mrb[0].mxu0
        %v1395 = vadd.f32 0.0, %v1394
        %v1396 = vpop.f32.mrb[0].mxu0
        %v1397 = vpop.f32.mrb[0].mxu0
        %v1398 = vadd.f32 0.0, %v1397
        %v1399 = vpop.f32.mrb[0].mxu0
        %1400 = vdwg.mxu0
        %1401 = vmatprep.subr.bf16.mxu0 0
        %1402 = vmatpush1.bf16.msra.mxu0 %v1256
        %1403 = vmatprep.subr.bf16.mxu0 0
        %1404 = vmatpush1.bf16.msra.mxu0 %v1257
        %1405 = vmatprep.subr.bf16.mxu0 0
        %1406 = vmatpush1.bf16.msra.mxu0 %v1258
        %1407 = vmatprep.subr.bf16.mxu0 0
        %1408 = vmatpush1.bf16.msra.mxu0 %v1259
        %1409 = vmatprep.subr.bf16.mxu0 0
        %1410 = vmatpush1.bf16.msra.mxu0 %v1260
        %1411 = vmatprep.subr.bf16.mxu0 0
        %1412 = vmatpush1.bf16.msra.mxu0 %v1261
        %1413 = vmatprep.subr.bf16.mxu0 0
        %1414 = vmatpush1.bf16.msra.mxu0 %v1262
        %1415 = vmatprep.subr.bf16.mxu0 0
        %1416 = vmatpush1.bf16.msra.mxu0 %v1263
        %1417 = vmatprep.subr.bf16.mxu0 0
        %1418 = vmatpush1.bf16.msra.mxu0 %v1264
        %1419 = vmatprep.subr.bf16.mxu0 0
        %1420 = vmatpush1.bf16.msra.mxu0 %v1265
        %1421 = vmatprep.subr.bf16.mxu0 0
        %1422 = vmatpush1.bf16.msra.mxu0 %v1266
        %1423 = vmatprep.subr.bf16.mxu0 0
        %1424 = vmatpush1.bf16.msra.mxu0 %v1267
        %1425 = vmatprep.subr.bf16.mxu0 0
        %1426 = vmatpush1.bf16.msra.mxu0 %v1268
        %1427 = vmatprep.subr.bf16.mxu0 0
        %1428 = vmatpush1.bf16.msra.mxu0 %v1269
        %1429 = vmatprep.subr.bf16.mxu0 0
        %1430 = vmatpush1.bf16.msra.mxu0 %v1270
        %1431 = vmatprep.subr.bf16.mxu0 0
        %1432 = vmatpush1.bf16.msra.mxu0 %v1271
        %1433 = vmatprep.mubr.bf16.mxu0 %v1019
        %1434 = vmatmul.mubr.bf16.gmra.mrb[0].mxu0 %v1018
        %v1435 = vpop.f32.mrb[0].mxu0
        %v1436 = vadd.f32 %v1339, %v1435
        %v1437 = vpop.f32.mrb[0].mxu0
        %v1438 = vpop.f32.mrb[0].mxu0
        %v1439 = vadd.f32 %v1342, %v1438
        %v1440 = vpop.f32.mrb[0].mxu0
        %1441 = vmatprep.mubr.bf16.mxu0 %v1023
        %1442 = vmatmul.mubr.bf16.gmra.mrb[0].mxu0 %v1022
        %v1443 = vpop.f32.mrb[0].mxu0
        %v1444 = vadd.f32 %v1347, %v1443
        %v1445 = vpop.f32.mrb[0].mxu0
        %v1446 = vpop.f32.mrb[0].mxu0
        %v1447 = vadd.f32 %v1350, %v1446
        %v1448 = vpop.f32.mrb[0].mxu0
        %1449 = vmatprep.mubr.bf16.mxu0 %v1027
        %1450 = vmatmul.mubr.bf16.gmra.mrb[0].mxu0 %v1026
        %v1451 = vpop.f32.mrb[0].mxu0
        %v1452 = vadd.f32 %v1355, %v1451
        %v1453 = vpop.f32.mrb[0].mxu0
        %v1454 = vpop.f32.mrb[0].mxu0
        %v1455 = vadd.f32 %v1358, %v1454
        %v1456 = vpop.f32.mrb[0].mxu0
        %1457 = vmatprep.mubr.bf16.mxu0 %v1031
        %1458 = vmatmul.mubr.bf16.gmra.mrb[0].mxu0 %v1030
        %v1459 = vpop.f32.mrb[0].mxu0
        %v1460 = vadd.f32 %v1363, %v1459
        %v1461 = vpop.f32.mrb[0].mxu0
        %v1462 = vpop.f32.mrb[0].mxu0
        %v1463 = vadd.f32 %v1366, %v1462
        %v1464 = vpop.f32.mrb[0].mxu0
        %1465 = vmatprep.mubr.bf16.mxu0 %v1035
        %1466 = vmatmul.mubr.bf16.gmra.mrb[0].mxu0 %v1034
        %v1467 = vpop.f32.mrb[0].mxu0
        %v1468 = vadd.f32 %v1371, %v1467
        %v1469 = vpop.f32.mrb[0].mxu0
        %v1470 = vpop.f32.mrb[0].mxu0
        %v1471 = vadd.f32 %v1374, %v1470
        %v1472 = vpop.f32.mrb[0].mxu0
        %1473 = vmatprep.mubr.bf16.mxu0 %v1039
        %1474 = vmatmul.mubr.bf16.gmra.mrb[0].mxu0 %v1038
        %v1475 = vpop.f32.mrb[0].mxu0
        %v1476 = vadd.f32 %v1379, %v1475
        %v1477 = vpop.f32.mrb[0].mxu0
        %v1478 = vpop.f32.mrb[0].mxu0
        %v1479 = vadd.f32 %v1382, %v1478
        %v1480 = vpop.f32.mrb[0].mxu0
        %1481 = vmatprep.mubr.bf16.mxu0 %v1043
        %1482 = vmatmul.mubr.bf16.gmra.mrb[0].mxu0 %v1042
        %v1483 = vpop.f32.mrb[0].mxu0
        %v1484 = vadd.f32 %v1387, %v1483
        %v1485 = vpop.f32.mrb[0].mxu0
        %v1486 = vpop.f32.mrb[0].mxu0
        %v1487 = vadd.f32 %v1390, %v1486
        %v1488 = vpop.f32.mrb[0].mxu0
        %1489 = vmatprep.mubr.bf16.mxu0 %v1047
        %1490 = vmatmul.mubr.bf16.gmra.mrb[0].mxu0 %v1046
        %v1491 = vpop.f32.mrb[0].mxu0
        %v1492 = vadd.f32 %v1395, %v1491
        %v1493 = vpop.f32.mrb[0].mxu0
        %v1494 = vpop.f32.mrb[0].mxu0
        %v1495 = vadd.f32 %v1398, %v1494
        %v1496 = vpop.f32.mrb[0].mxu0
        %1497 = vdwg.mxu0
        %v1498 = vadd.f32 %v431, %v1436
        %v1499 = vadd.f32 %v432, %v1439
        %v1500 = vadd.f32 %v433, %v1444
        %v1501 = vadd.f32 %v434, %v1447
        %v1502 = vadd.f32 %v435, %v1452
        %v1503 = vadd.f32 %v436, %v1455
        %v1504 = vadd.f32 %v437, %v1460
        %v1505 = vadd.f32 %v438, %v1463
        %v1506 = vadd.f32 %v439, %v1468
        %v1507 = vadd.f32 %v440, %v1471
        %v1508 = vadd.f32 %v441, %v1476
        %v1509 = vadd.f32 %v442, %v1479
        %v1510 = vadd.f32 %v443, %v1484
        %v1511 = vadd.f32 %v444, %v1487
        %v1512 = vadd.f32 %v445, %v1492
        %v1513 = vadd.f32 %v446, %v1495
        %v1514 = vld [vmem:[#allocation4] sm:$0x1]
        %v1516 = vlaneseq
        %v1517 = vshrl.u32 %v1516, 7
        %v1518 = vsub.s32 0, %v1517
        %v1519 = vrot.slane %v1514, %v1518
        %v1521 = vadd.f32 %v1498, %v1519
        %v1522 = vadd.f32 %v1499, %v1519
        %v1523 = vadd.f32 %v1500, %v1519
        %v1524 = vadd.f32 %v1501, %v1519
        %v1525 = vadd.f32 %v1502, %v1519
        %v1526 = vadd.f32 %v1503, %v1519
        %v1527 = vadd.f32 %v1504, %v1519
        %v1528 = vadd.f32 %v1505, %v1519
        %v1529 = vadd.f32 %v1506, %v1519
        %v1530 = vadd.f32 %v1507, %v1519
        %v1531 = vadd.f32 %v1508, %v1519
        %v1532 = vadd.f32 %v1509, %v1519
        %v1533 = vadd.f32 %v1510, %v1519
        %v1534 = vadd.f32 %v1511, %v1519
        %v1535 = vadd.f32 %v1512, %v1519
        %v1536 = vadd.f32 %v1513, %v1519
        %vm1537 = vcmp.gt.f32.partialorder %v1521, 0.0
        %vm1538 = vcmp.gt.f32.partialorder %v1522, 0.0
        %vm1539 = vcmp.gt.f32.partialorder %v1523, 0.0
        %vm1540 = vcmp.gt.f32.partialorder %v1524, 0.0
        %vm1541 = vcmp.gt.f32.partialorder %v1525, 0.0
        %vm1542 = vcmp.gt.f32.partialorder %v1526, 0.0
        %vm1543 = vcmp.gt.f32.partialorder %v1527, 0.0
        %vm1544 = vcmp.gt.f32.partialorder %v1528, 0.0
        %vm1545 = vcmp.gt.f32.partialorder %v1529, 0.0
        %vm1546 = vcmp.gt.f32.partialorder %v1530, 0.0
        %vm1547 = vcmp.gt.f32.partialorder %v1531, 0.0
        %vm1548 = vcmp.gt.f32.partialorder %v1532, 0.0
        %vm1549 = vcmp.gt.f32.partialorder %v1533, 0.0
        %vm1550 = vcmp.gt.f32.partialorder %v1534, 0.0
        %vm1551 = vcmp.gt.f32.partialorder %v1535, 0.0
        %vm1552 = vcmp.gt.f32.partialorder %v1536, 0.0
        %v1553 = vmul.f32 %v1521, 0.2
        %v1554 = vmul.f32 %v1522, 0.2
        %v1555 = vmul.f32 %v1523, 0.2
        %v1556 = vmul.f32 %v1524, 0.2
        %v1557 = vmul.f32 %v1525, 0.2
        %v1558 = vmul.f32 %v1526, 0.2
        %v1559 = vmul.f32 %v1527, 0.2
        %v1560 = vmul.f32 %v1528, 0.2
        %v1561 = vmul.f32 %v1529, 0.2
        %v1562 = vmul.f32 %v1530, 0.2
        %v1563 = vmul.f32 %v1531, 0.2
        %v1564 = vmul.f32 %v1532, 0.2
        %v1565 = vmul.f32 %v1533, 0.2
        %v1566 = vmul.f32 %v1534, 0.2
        %v1567 = vmul.f32 %v1535, 0.2
        %v1568 = vmul.f32 %v1536, 0.2
        %v1569 = vsel %vm1537, %v1521, %v1553
        %v1570 = vsel %vm1538, %v1522, %v1554
        %v1571 = vsel %vm1539, %v1523, %v1555
        %v1572 = vsel %vm1540, %v1524, %v1556
        %v1573 = vsel %vm1541, %v1525, %v1557
        %v1574 = vsel %vm1542, %v1526, %v1558
        %v1575 = vsel %vm1543, %v1527, %v1559
        %v1576 = vsel %vm1544, %v1528, %v1560
        %v1577 = vsel %vm1545, %v1529, %v1561
        %v1578 = vsel %vm1546, %v1530, %v1562
        %v1579 = vsel %vm1547, %v1531, %v1563
        %v1580 = vsel %vm1548, %v1532, %v1564
        %v1581 = vsel %vm1549, %v1533, %v1565
        %v1582 = vsel %vm1550, %v1534, %v1566
        %v1583 = vsel %vm1551, %v1535, %v1567
        %v1584 = vsel %vm1552, %v1536, %v1568
        %1601 = vrot.lane.b32.xlu0 %v1569, 64
        %v1602 = vpop.permute.xlu0 %1601
        %1603 = vrot.lane.b32.xlu0 %v1570, 64
        %v1604 = vpop.permute.xlu0 %1603
        %1605 = vrot.lane.b32.xlu0 %v1571, 64
        %v1606 = vpop.permute.xlu0 %1605
        %1607 = vrot.lane.b32.xlu0 %v1572, 64
        %v1608 = vpop.permute.xlu0 %1607
        %1609 = vrot.lane.b32.xlu0 %v1573, 64
        %v1610 = vpop.permute.xlu0 %1609
        %1611 = vrot.lane.b32.xlu0 %v1574, 64
        %v1612 = vpop.permute.xlu0 %1611
        %1613 = vrot.lane.b32.xlu0 %v1575, 64
        %v1614 = vpop.permute.xlu0 %1613
        %1615 = vrot.lane.b32.xlu0 %v1576, 64
        %v1616 = vpop.permute.xlu0 %1615
        %1617 = vrot.lane.b32.xlu0 %v1577, 64
        %v1618 = vpop.permute.xlu0 %1617
        %1619 = vrot.lane.b32.xlu0 %v1578, 64
        %v1620 = vpop.permute.xlu0 %1619
        %1621 = vrot.lane.b32.xlu0 %v1579, 64
        %v1622 = vpop.permute.xlu0 %1621
        %1623 = vrot.lane.b32.xlu0 %v1580, 64
        %v1624 = vpop.permute.xlu0 %1623
        %1625 = vrot.lane.b32.xlu0 %v1581, 64
        %v1626 = vpop.permute.xlu0 %1625
        %1627 = vrot.lane.b32.xlu0 %v1582, 64
        %v1628 = vpop.permute.xlu0 %1627
        %1629 = vrot.lane.b32.xlu0 %v1583, 64
        %v1630 = vpop.permute.xlu0 %1629
        %1631 = vrot.lane.b32.xlu0 %v1584, 64
        %v1632 = vpop.permute.xlu0 %1631
        %v1649 = vsel %vm573, %v431, %v1602
        %v1650 = vsel %vm573, %v432, %v1604
        %v1651 = vsel %vm573, %v433, %v1606
        %v1652 = vsel %vm573, %v434, %v1608
        %v1653 = vsel %vm573, %v435, %v1610
        %v1654 = vsel %vm573, %v436, %v1612
        %v1655 = vsel %vm573, %v437, %v1614
        %v1656 = vsel %vm573, %v438, %v1616
        %v1657 = vsel %vm573, %v439, %v1618
        %v1658 = vsel %vm573, %v440, %v1620
        %v1659 = vsel %vm573, %v441, %v1622
        %v1660 = vsel %vm573, %v442, %v1624
        %v1661 = vsel %vm573, %v443, %v1626
        %v1662 = vsel %vm573, %v444, %v1628
        %v1663 = vsel %vm573, %v445, %v1630
        %v1664 = vsel %vm573, %v446, %v1632
        %v1665 = vpack.c.bf16 %v1650, %v1649
        %v1666 = vpack.c.bf16 %v1652, %v1651
        %v1667 = vpack.c.bf16 %v1654, %v1653
        %v1668 = vpack.c.bf16 %v1656, %v1655
        %v1669 = vpack.c.bf16 %v1658, %v1657
        %v1670 = vpack.c.bf16 %v1660, %v1659
        %v1671 = vpack.c.bf16 %v1662, %v1661
        %v1672 = vpack.c.bf16 %v1664, %v1663
        %v1673 = vld [vmem:[%s5] sm:$0xff]
        %v1674 = vld [vmem:[%s5 + $0x8] sm:$0xff]
        %v1675 = vld [vmem:[%s5 + $0x10] sm:$0xff]
        %v1676 = vld [vmem:[%s5 + $0x18] sm:$0xff]
        %v1677 = vld [vmem:[%s5 + $0x20] sm:$0xff]
        %v1678 = vld [vmem:[%s5 + $0x28] sm:$0xff]
        %v1679 = vld [vmem:[%s5 + $0x30] sm:$0xff]
        %v1680 = vld [vmem:[%s5 + $0x38] sm:$0xff]
        %v1681 = vld [vmem:[%s5 + $0x40] sm:$0xff]
        %v1682 = vld [vmem:[%s5 + $0x48] sm:$0xff]
        %v1683 = vld [vmem:[%s5 + $0x50] sm:$0xff]
        %v1684 = vld [vmem:[%s5 + $0x58] sm:$0xff]
        %v1685 = vld [vmem:[%s5 + $0x60] sm:$0xff]
        %v1686 = vld [vmem:[%s5 + $0x68] sm:$0xff]
        %v1687 = vld [vmem:[%s5 + $0x70] sm:$0xff]
        %v1688 = vld [vmem:[%s5 + $0x78] sm:$0xff]
        %v1689 = vld [vmem:[%s5 + $0x80] sm:$0xff]
        %v1690 = vld [vmem:[%s5 + $0x88] sm:$0xff]
        %v1691 = vld [vmem:[%s5 + $0x90] sm:$0xff]
        %v1692 = vld [vmem:[%s5 + $0x98] sm:$0xff]
        %v1693 = vld [vmem:[%s5 + $0xa0] sm:$0xff]
        %v1694 = vld [vmem:[%s5 + $0xa8] sm:$0xff]
        %v1695 = vld [vmem:[%s5 + $0xb0] sm:$0xff]
        %v1696 = vld [vmem:[%s5 + $0xb8] sm:$0xff]
        %v1697 = vld [vmem:[%s5 + $0xc0] sm:$0xff]
        %v1698 = vld [vmem:[%s5 + $0xc8] sm:$0xff]
        %v1699 = vld [vmem:[%s5 + $0xd0] sm:$0xff]
        %v1700 = vld [vmem:[%s5 + $0xd8] sm:$0xff]
        %v1701 = vld [vmem:[%s5 + $0xe0] sm:$0xff]
        %v1702 = vld [vmem:[%s5 + $0xe8] sm:$0xff]
        %v1703 = vld [vmem:[%s5 + $0xf0] sm:$0xff]
        %v1704 = vld [vmem:[%s5 + $0xf8] sm:$0xff]
        %v1705 = vld [vmem:[%s6] sm:$0xf]
        %v1707 = vlaneseq
        %v1708 = vshrl.u32 %v1707, 7
        %v1709 = vsub.s32 0, %v1708
        %v1710 = vrot.slane %v1705, %v1709
        %v1711 = vlaneseq
        %v1712 = vshrl.u32 %v1711, 7
        %v1713 = vsub.s32 1, %v1712
        %v1714 = vrot.slane %v1705, %v1713
        %v1715 = vlaneseq
        %v1716 = vshrl.u32 %v1715, 7
        %v1717 = vsub.s32 2, %v1716
        %v1718 = vrot.slane %v1705, %v1717
        %v1719 = vlaneseq
        %v1720 = vshrl.u32 %v1719, 7
        %v1721 = vsub.s32 3, %v1720
        %v1722 = vrot.slane %v1705, %v1721
        %v1759 = vunpack.c.l.b16 %v1673
        %v1760 = vunpack.c.h.b16 %v1673
        %v1761 = vunpack.c.l.b16 %v1674
        %v1762 = vunpack.c.h.b16 %v1674
        %v1763 = vunpack.c.l.b16 %v1675
        %v1764 = vunpack.c.h.b16 %v1675
        %v1765 = vunpack.c.l.b16 %v1676
        %v1766 = vunpack.c.h.b16 %v1676
        %v1767 = vunpack.c.l.b16 %v1677
        %v1768 = vunpack.c.h.b16 %v1677
        %v1769 = vunpack.c.l.b16 %v1678
        %v1770 = vunpack.c.h.b16 %v1678
        %v1771 = vunpack.c.l.b16 %v1679
        %v1772 = vunpack.c.h.b16 %v1679
        %v1773 = vunpack.c.l.b16 %v1680
        %v1774 = vunpack.c.h.b16 %v1680
        %v1775 = vunpack.c.l.b16 %v1681
        %v1776 = vunpack.c.h.b16 %v1681
        %v1777 = vunpack.c.l.b16 %v1682
        %v1778 = vunpack.c.h.b16 %v1682
        %v1779 = vunpack.c.l.b16 %v1683
        %v1780 = vunpack.c.h.b16 %v1683
        %v1781 = vunpack.c.l.b16 %v1684
        %v1782 = vunpack.c.h.b16 %v1684
        %v1783 = vunpack.c.l.b16 %v1685
        %v1784 = vunpack.c.h.b16 %v1685
        %v1785 = vunpack.c.l.b16 %v1686
        %v1786 = vunpack.c.h.b16 %v1686
        %v1787 = vunpack.c.l.b16 %v1687
        %v1788 = vunpack.c.h.b16 %v1687
        %v1789 = vunpack.c.l.b16 %v1688
        %v1790 = vunpack.c.h.b16 %v1688
        %v1791 = vunpack.c.l.b16 %v1689
        %v1792 = vunpack.c.h.b16 %v1689
        %v1793 = vunpack.c.l.b16 %v1690
        %v1794 = vunpack.c.h.b16 %v1690
        %v1795 = vunpack.c.l.b16 %v1691
        %v1796 = vunpack.c.h.b16 %v1691
        %v1797 = vunpack.c.l.b16 %v1692
        %v1798 = vunpack.c.h.b16 %v1692
        %v1799 = vunpack.c.l.b16 %v1693
        %v1800 = vunpack.c.h.b16 %v1693
        %v1801 = vunpack.c.l.b16 %v1694
        %v1802 = vunpack.c.h.b16 %v1694
        %v1803 = vunpack.c.l.b16 %v1695
        %v1804 = vunpack.c.h.b16 %v1695
        %v1805 = vunpack.c.l.b16 %v1696
        %v1806 = vunpack.c.h.b16 %v1696
        %v1807 = vunpack.c.l.b16 %v1697
        %v1808 = vunpack.c.h.b16 %v1697
        %v1809 = vunpack.c.l.b16 %v1698
        %v1810 = vunpack.c.h.b16 %v1698
        %v1811 = vunpack.c.l.b16 %v1699
        %v1812 = vunpack.c.h.b16 %v1699
        %v1813 = vunpack.c.l.b16 %v1700
        %v1814 = vunpack.c.h.b16 %v1700
        %v1815 = vunpack.c.l.b16 %v1701
        %v1816 = vunpack.c.h.b16 %v1701
        %v1817 = vunpack.c.l.b16 %v1702
        %v1818 = vunpack.c.h.b16 %v1702
        %v1819 = vunpack.c.l.b16 %v1703
        %v1820 = vunpack.c.h.b16 %v1703
        %v1821 = vunpack.c.l.b16 %v1704
        %v1822 = vunpack.c.h.b16 %v1704
        %v1823 = vpack.c.b16 %v1763, %v1759
        %v1824 = vpack.c.b16 %v1764, %v1760
        %v1825 = vpack.c.b16 %v1765, %v1761
        %v1826 = vpack.c.b16 %v1766, %v1762
        %v1827 = vpack.c.b16 %v1771, %v1767
        %v1828 = vpack.c.b16 %v1772, %v1768
        %v1829 = vpack.c.b16 %v1773, %v1769
        %v1830 = vpack.c.b16 %v1774, %v1770
        %v1831 = vpack.c.b16 %v1779, %v1775
        %v1832 = vpack.c.b16 %v1780, %v1776
        %v1833 = vpack.c.b16 %v1781, %v1777
        %v1834 = vpack.c.b16 %v1782, %v1778
        %v1835 = vpack.c.b16 %v1787, %v1783
        %v1836 = vpack.c.b16 %v1788, %v1784
        %v1837 = vpack.c.b16 %v1789, %v1785
        %v1838 = vpack.c.b16 %v1790, %v1786
        %v1839 = vpack.c.b16 %v1795, %v1791
        %v1840 = vpack.c.b16 %v1796, %v1792
        %v1841 = vpack.c.b16 %v1797, %v1793
        %v1842 = vpack.c.b16 %v1798, %v1794
        %v1843 = vpack.c.b16 %v1803, %v1799
        %v1844 = vpack.c.b16 %v1804, %v1800
        %v1845 = vpack.c.b16 %v1805, %v1801
        %v1846 = vpack.c.b16 %v1806, %v1802
        %v1847 = vpack.c.b16 %v1811, %v1807
        %v1848 = vpack.c.b16 %v1812, %v1808
        %v1849 = vpack.c.b16 %v1813, %v1809
        %v1850 = vpack.c.b16 %v1814, %v1810
        %v1851 = vpack.c.b16 %v1819, %v1815
        %v1852 = vpack.c.b16 %v1820, %v1816
        %v1853 = vpack.c.b16 %v1821, %v1817
        %v1854 = vpack.c.b16 %v1822, %v1818
        %1887 = vmatprep.subr.bf16.mxu0 %v1824
        %1888 = vmatpush1.bf16.msra.mxu0 %v1823
        %1889 = vmatprep.subr.bf16.mxu0 %v1828
        %1890 = vmatpush1.bf16.msra.mxu0 %v1827
        %1891 = vmatprep.subr.bf16.mxu0 %v1832
        %1892 = vmatpush1.bf16.msra.mxu0 %v1831
        %1893 = vmatprep.subr.bf16.mxu0 %v1836
        %1894 = vmatpush1.bf16.msra.mxu0 %v1835
        %1895 = vmatprep.subr.bf16.mxu0 %v1840
        %1896 = vmatpush1.bf16.msra.mxu0 %v1839
        %1897 = vmatprep.subr.bf16.mxu0 %v1844
        %1898 = vmatpush1.bf16.msra.mxu0 %v1843
        %1899 = vmatprep.subr.bf16.mxu0 %v1848
        %1900 = vmatpush1.bf16.msra.mxu0 %v1847
        %1901 = vmatprep.subr.bf16.mxu0 %v1852
        %1902 = vmatpush1.bf16.msra.mxu0 %v1851
        %1903 = vmatprep.subr.bf16.mxu0 0
        %1904 = vmatpush1.bf16.msra.mxu0 0
        %1905 = vmatprep.subr.bf16.mxu0 0
        %1906 = vmatpush1.bf16.msra.mxu0 0
        %1907 = vmatprep.subr.bf16.mxu0 0
        %1908 = vmatpush1.bf16.msra.mxu0 0
        %1909 = vmatprep.subr.bf16.mxu0 0
        %1910 = vmatpush1.bf16.msra.mxu0 0
        %1911 = vmatprep.subr.bf16.mxu0 0
        %1912 = vmatpush1.bf16.msra.mxu0 0
        %1913 = vmatprep.subr.bf16.mxu0 0
        %1914 = vmatpush1.bf16.msra.mxu0 0
        %1915 = vmatprep.subr.bf16.mxu0 0
        %1916 = vmatpush1.bf16.msra.mxu0 0
        %1917 = vmatprep.subr.bf16.mxu0 0
        %1918 = vmatpush1.bf16.msra.mxu0 0
        %1919 = vmatprep.mubr.bf16.mxu0 0
        %1920 = vmatmul.mubr.bf16.gmra.mrb[0].mxu0 %v1665
        %v1921 = vpop.f32.mrb[0].mxu0
        %v1922 = vadd.f32 %v1710, %v1921
        %v1923 = vpop.f32.mrb[0].mxu0
        %v1924 = vadd.f32 %v1714, %v1923
        %v1925 = vpop.f32.mrb[0].mxu0
        %v1926 = vadd.f32 %v1710, %v1925
        %v1927 = vpop.f32.mrb[0].mxu0
        %v1928 = vadd.f32 %v1714, %v1927
        %1929 = vmatprep.mubr.bf16.mxu0 0
        %1930 = vmatmul.mubr.bf16.gmra.mrb[0].mxu0 %v1666
        %v1931 = vpop.f32.mrb[0].mxu0
        %v1932 = vadd.f32 %v1710, %v1931
        %v1933 = vpop.f32.mrb[0].mxu0
        %v1934 = vadd.f32 %v1714, %v1933
        %v1935 = vpop.f32.mrb[0].mxu0
        %v1936 = vadd.f32 %v1710, %v1935
        %v1937 = vpop.f32.mrb[0].mxu0
        %v1938 = vadd.f32 %v1714, %v1937
        %1939 = vmatprep.mubr.bf16.mxu0 0
        %1940 = vmatmul.mubr.bf16.gmra.mrb[0].mxu0 %v1667
        %v1941 = vpop.f32.mrb[0].mxu0
        %v1942 = vadd.f32 %v1710, %v1941
        %v1943 = vpop.f32.mrb[0].mxu0
        %v1944 = vadd.f32 %v1714, %v1943
        %v1945 = vpop.f32.mrb[0].mxu0
        %v1946 = vadd.f32 %v1710, %v1945
        %v1947 = vpop.f32.mrb[0].mxu0
        %v1948 = vadd.f32 %v1714, %v1947
        %1949 = vmatprep.mubr.bf16.mxu0 0
        %1950 = vmatmul.mubr.bf16.gmra.mrb[0].mxu0 %v1668
        %v1951 = vpop.f32.mrb[0].mxu0
        %v1952 = vadd.f32 %v1710, %v1951
        %v1953 = vpop.f32.mrb[0].mxu0
        %v1954 = vadd.f32 %v1714, %v1953
        %v1955 = vpop.f32.mrb[0].mxu0
        %v1956 = vadd.f32 %v1710, %v1955
        %v1957 = vpop.f32.mrb[0].mxu0
        %v1958 = vadd.f32 %v1714, %v1957
        %1959 = vmatprep.mubr.bf16.mxu0 0
        %1960 = vmatmul.mubr.bf16.gmra.mrb[0].mxu0 %v1669
        %v1961 = vpop.f32.mrb[0].mxu0
        %v1962 = vadd.f32 %v1710, %v1961
        %v1963 = vpop.f32.mrb[0].mxu0
        %v1964 = vadd.f32 %v1714, %v1963
        %v1965 = vpop.f32.mrb[0].mxu0
        %v1966 = vadd.f32 %v1710, %v1965
        %v1967 = vpop.f32.mrb[0].mxu0
        %v1968 = vadd.f32 %v1714, %v1967
        %1969 = vmatprep.mubr.bf16.mxu0 0
        %1970 = vmatmul.mubr.bf16.gmra.mrb[0].mxu0 %v1670
        %v1971 = vpop.f32.mrb[0].mxu0
        %v1972 = vadd.f32 %v1710, %v1971
        %v1973 = vpop.f32.mrb[0].mxu0
        %v1974 = vadd.f32 %v1714, %v1973
        %v1975 = vpop.f32.mrb[0].mxu0
        %v1976 = vadd.f32 %v1710, %v1975
        %v1977 = vpop.f32.mrb[0].mxu0
        %v1978 = vadd.f32 %v1714, %v1977
        %1979 = vmatprep.mubr.bf16.mxu0 0
        %1980 = vmatmul.mubr.bf16.gmra.mrb[0].mxu0 %v1671
        %v1981 = vpop.f32.mrb[0].mxu0
        %v1982 = vadd.f32 %v1710, %v1981
        %v1983 = vpop.f32.mrb[0].mxu0
        %v1984 = vadd.f32 %v1714, %v1983
        %v1985 = vpop.f32.mrb[0].mxu0
        %v1986 = vadd.f32 %v1710, %v1985
        %v1987 = vpop.f32.mrb[0].mxu0
        %v1988 = vadd.f32 %v1714, %v1987
        %1989 = vmatprep.mubr.bf16.mxu0 0
        %1990 = vmatmul.mubr.bf16.gmra.mrb[0].mxu0 %v1672
        %v1991 = vpop.f32.mrb[0].mxu0
        %v1992 = vadd.f32 %v1710, %v1991
        %v1993 = vpop.f32.mrb[0].mxu0
        %v1994 = vadd.f32 %v1714, %v1993
        %v1995 = vpop.f32.mrb[0].mxu0
        %v1996 = vadd.f32 %v1710, %v1995
        %v1997 = vpop.f32.mrb[0].mxu0
        %v1998 = vadd.f32 %v1714, %v1997
        %1999 = vdwg.mxu0
        %2000 = vmatprep.subr.bf16.mxu0 %v1826
        %2001 = vmatpush1.bf16.msra.mxu0 %v1825
        %2002 = vmatprep.subr.bf16.mxu0 %v1830
        %2003 = vmatpush1.bf16.msra.mxu0 %v1829
        %2004 = vmatprep.subr.bf16.mxu0 %v1834
        %2005 = vmatpush1.bf16.msra.mxu0 %v1833
        %2006 = vmatprep.subr.bf16.mxu0 %v1838
        %2007 = vmatpush1.bf16.msra.mxu0 %v1837
        %2008 = vmatprep.subr.bf16.mxu0 %v1842
        %2009 = vmatpush1.bf16.msra.mxu0 %v1841
        %2010 = vmatprep.subr.bf16.mxu0 %v1846
        %2011 = vmatpush1.bf16.msra.mxu0 %v1845
        %2012 = vmatprep.subr.bf16.mxu0 %v1850
        %2013 = vmatpush1.bf16.msra.mxu0 %v1849
        %2014 = vmatprep.subr.bf16.mxu0 %v1854
        %2015 = vmatpush1.bf16.msra.mxu0 %v1853
        %2016 = vmatprep.subr.bf16.mxu0 0
        %2017 = vmatpush1.bf16.msra.mxu0 0
        %2018 = vmatprep.subr.bf16.mxu0 0
        %2019 = vmatpush1.bf16.msra.mxu0 0
        %2020 = vmatprep.subr.bf16.mxu0 0
        %2021 = vmatpush1.bf16.msra.mxu0 0
        %2022 = vmatprep.subr.bf16.mxu0 0
        %2023 = vmatpush1.bf16.msra.mxu0 0
        %2024 = vmatprep.subr.bf16.mxu0 0
        %2025 = vmatpush1.bf16.msra.mxu0 0
        %2026 = vmatprep.subr.bf16.mxu0 0
        %2027 = vmatpush1.bf16.msra.mxu0 0
        %2028 = vmatprep.subr.bf16.mxu0 0
        %2029 = vmatpush1.bf16.msra.mxu0 0
        %2030 = vmatprep.subr.bf16.mxu0 0
        %2031 = vmatpush1.bf16.msra.mxu0 0
        %2032 = vmatprep.mubr.bf16.mxu0 0
        %2033 = vmatmul.mubr.bf16.gmra.mrb[0].mxu0 %v1665
        %v2034 = vpop.f32.mrb[0].mxu0
        %v2035 = vadd.f32 %v1718, %v2034
        %v2036 = vpop.f32.mrb[0].mxu0
        %v2037 = vadd.f32 %v1722, %v2036
        %v2038 = vpop.f32.mrb[0].mxu0
        %v2039 = vadd.f32 %v1718, %v2038
        %v2040 = vpop.f32.mrb[0].mxu0
        %v2041 = vadd.f32 %v1722, %v2040
        %2042 = vmatprep.mubr.bf16.mxu0 0
        %2043 = vmatmul.mubr.bf16.gmra.mrb[0].mxu0 %v1666
        %v2044 = vpop.f32.mrb[0].mxu0
        %v2045 = vadd.f32 %v1718, %v2044
        %v2046 = vpop.f32.mrb[0].mxu0
        %v2047 = vadd.f32 %v1722, %v2046
        %v2048 = vpop.f32.mrb[0].mxu0
        %v2049 = vadd.f32 %v1718, %v2048
        %v2050 = vpop.f32.mrb[0].mxu0
        %v2051 = vadd.f32 %v1722, %v2050
        %2052 = vmatprep.mubr.bf16.mxu0 0
        %2053 = vmatmul.mubr.bf16.gmra.mrb[0].mxu0 %v1667
        %v2054 = vpop.f32.mrb[0].mxu0
        %v2055 = vadd.f32 %v1718, %v2054
        %v2056 = vpop.f32.mrb[0].mxu0
        %v2057 = vadd.f32 %v1722, %v2056
        %v2058 = vpop.f32.mrb[0].mxu0
        %v2059 = vadd.f32 %v1718, %v2058
        %v2060 = vpop.f32.mrb[0].mxu0
        %v2061 = vadd.f32 %v1722, %v2060
        %2062 = vmatprep.mubr.bf16.mxu0 0
        %2063 = vmatmul.mubr.bf16.gmra.mrb[0].mxu0 %v1668
        %v2064 = vpop.f32.mrb[0].mxu0
        %v2065 = vadd.f32 %v1718, %v2064
        %v2066 = vpop.f32.mrb[0].mxu0
        %v2067 = vadd.f32 %v1722, %v2066
        %v2068 = vpop.f32.mrb[0].mxu0
        %v2069 = vadd.f32 %v1718, %v2068
        %v2070 = vpop.f32.mrb[0].mxu0
        %v2071 = vadd.f32 %v1722, %v2070
        %2072 = vmatprep.mubr.bf16.mxu0 0
        %2073 = vmatmul.mubr.bf16.gmra.mrb[0].mxu0 %v1669
        %v2074 = vpop.f32.mrb[0].mxu0
        %v2075 = vadd.f32 %v1718, %v2074
        %v2076 = vpop.f32.mrb[0].mxu0
        %v2077 = vadd.f32 %v1722, %v2076
        %v2078 = vpop.f32.mrb[0].mxu0
        %v2079 = vadd.f32 %v1718, %v2078
        %v2080 = vpop.f32.mrb[0].mxu0
        %v2081 = vadd.f32 %v1722, %v2080
        %2082 = vmatprep.mubr.bf16.mxu0 0
        %2083 = vmatmul.mubr.bf16.gmra.mrb[0].mxu0 %v1670
        %v2084 = vpop.f32.mrb[0].mxu0
        %v2085 = vadd.f32 %v1718, %v2084
        %v2086 = vpop.f32.mrb[0].mxu0
        %v2087 = vadd.f32 %v1722, %v2086
        %v2088 = vpop.f32.mrb[0].mxu0
        %v2089 = vadd.f32 %v1718, %v2088
        %v2090 = vpop.f32.mrb[0].mxu0
        %v2091 = vadd.f32 %v1722, %v2090
        %2092 = vmatprep.mubr.bf16.mxu0 0
        %2093 = vmatmul.mubr.bf16.gmra.mrb[0].mxu0 %v1671
        %v2094 = vpop.f32.mrb[0].mxu0
        %v2095 = vadd.f32 %v1718, %v2094
        %v2096 = vpop.f32.mrb[0].mxu0
        %v2097 = vadd.f32 %v1722, %v2096
        %v2098 = vpop.f32.mrb[0].mxu0
        %v2099 = vadd.f32 %v1718, %v2098
        %v2100 = vpop.f32.mrb[0].mxu0
        %v2101 = vadd.f32 %v1722, %v2100
        %2102 = vmatprep.mubr.bf16.mxu0 0
        %2103 = vmatmul.mubr.bf16.gmra.mrb[0].mxu0 %v1672
        %v2104 = vpop.f32.mrb[0].mxu0
        %v2105 = vadd.f32 %v1718, %v2104
        %v2106 = vpop.f32.mrb[0].mxu0
        %v2107 = vadd.f32 %v1722, %v2106
        %v2108 = vpop.f32.mrb[0].mxu0
        %v2109 = vadd.f32 %v1718, %v2108
        %v2110 = vpop.f32.mrb[0].mxu0
        %v2111 = vadd.f32 %v1722, %v2110
        %2112 = vdwg.mxu0
        %vm2113 = vcmp.gt.f32.partialorder %v1922, 0.0
        %vm2114 = vcmp.gt.f32.partialorder %v1924, 0.0
        %vm2115 = vcmp.gt.f32.partialorder %v2035, 0.0
        %vm2116 = vcmp.gt.f32.partialorder %v2037, 0.0
        %vm2117 = vcmp.gt.f32.partialorder %v1926, 0.0
        %vm2118 = vcmp.gt.f32.partialorder %v1928, 0.0
        %vm2119 = vcmp.gt.f32.partialorder %v2039, 0.0
        %vm2120 = vcmp.gt.f32.partialorder %v2041, 0.0
        %vm2121 = vcmp.gt.f32.partialorder %v1932, 0.0
        %vm2122 = vcmp.gt.f32.partialorder %v1934, 0.0
        %vm2123 = vcmp.gt.f32.partialorder %v2045, 0.0
        %vm2124 = vcmp.gt.f32.partialorder %v2047, 0.0
        %vm2125 = vcmp.gt.f32.partialorder %v1936, 0.0
        %vm2126 = vcmp.gt.f32.partialorder %v1938, 0.0
        %vm2127 = vcmp.gt.f32.partialorder %v2049, 0.0
        %vm2128 = vcmp.gt.f32.partialorder %v2051, 0.0
        %vm2129 = vcmp.gt.f32.partialorder %v1942, 0.0
        %vm2130 = vcmp.gt.f32.partialorder %v1944, 0.0
        %vm2131 = vcmp.gt.f32.partialorder %v2055, 0.0
        %vm2132 = vcmp.gt.f32.partialorder %v2057, 0.0
        %vm2133 = vcmp.gt.f32.partialorder %v1946, 0.0
        %vm2134 = vcmp.gt.f32.partialorder %v1948, 0.0
        %vm2135 = vcmp.gt.f32.partialorder %v2059, 0.0
        %vm2136 = vcmp.gt.f32.partialorder %v2061, 0.0
        %vm2137 = vcmp.gt.f32.partialorder %v1952, 0.0
        %vm2138 = vcmp.gt.f32.partialorder %v1954, 0.0
        %vm2139 = vcmp.gt.f32.partialorder %v2065, 0.0
        %vm2140 = vcmp.gt.f32.partialorder %v2067, 0.0
        %vm2141 = vcmp.gt.f32.partialorder %v1956, 0.0
        %vm2142 = vcmp.gt.f32.partialorder %v1958, 0.0
        %vm2143 = vcmp.gt.f32.partialorder %v2069, 0.0
        %vm2144 = vcmp.gt.f32.partialorder %v2071, 0.0
        %vm2145 = vcmp.gt.f32.partialorder %v1962, 0.0
        %vm2146 = vcmp.gt.f32.partialorder %v1964, 0.0
        %vm2147 = vcmp.gt.f32.partialorder %v2075, 0.0
        %vm2148 = vcmp.gt.f32.partialorder %v2077, 0.0
        %vm2149 = vcmp.gt.f32.partialorder %v1966, 0.0
        %vm2150 = vcmp.gt.f32.partialorder %v1968, 0.0
        %vm2151 = vcmp.gt.f32.partialorder %v2079, 0.0
        %vm2152 = vcmp.gt.f32.partialorder %v2081, 0.0
        %vm2153 = vcmp.gt.f32.partialorder %v1972, 0.0
        %vm2154 = vcmp.gt.f32.partialorder %v1974, 0.0
        %vm2155 = vcmp.gt.f32.partialorder %v2085, 0.0
        %vm2156 = vcmp.gt.f32.partialorder %v2087, 0.0
        %vm2157 = vcmp.gt.f32.partialorder %v1976, 0.0
        %vm2158 = vcmp.gt.f32.partialorder %v1978, 0.0
        %vm2159 = vcmp.gt.f32.partialorder %v2089, 0.0
        %vm2160 = vcmp.gt.f32.partialorder %v2091, 0.0
        %vm2161 = vcmp.gt.f32.partialorder %v1982, 0.0
        %vm2162 = vcmp.gt.f32.partialorder %v1984, 0.0
        %vm2163 = vcmp.gt.f32.partialorder %v2095, 0.0
        %vm2164 = vcmp.gt.f32.partialorder %v2097, 0.0
        %vm2165 = vcmp.gt.f32.partialorder %v1986, 0.0
        %vm2166 = vcmp.gt.f32.partialorder %v1988, 0.0
        %vm2167 = vcmp.gt.f32.partialorder %v2099, 0.0
        %vm2168 = vcmp.gt.f32.partialorder %v2101, 0.0
        %vm2169 = vcmp.gt.f32.partialorder %v1992, 0.0
        %vm2170 = vcmp.gt.f32.partialorder %v1994, 0.0
        %vm2171 = vcmp.gt.f32.partialorder %v2105, 0.0
        %vm2172 = vcmp.gt.f32.partialorder %v2107, 0.0
        %vm2173 = vcmp.gt.f32.partialorder %v1996, 0.0
        %vm2174 = vcmp.gt.f32.partialorder %v1998, 0.0
        %vm2175 = vcmp.gt.f32.partialorder %v2109, 0.0
        %vm2176 = vcmp.gt.f32.partialorder %v2111, 0.0
        %v2177 = vmul.f32 %v1922, 0.2
        %v2178 = vmul.f32 %v1924, 0.2
        %v2179 = vmul.f32 %v2035, 0.2
        %v2180 = vmul.f32 %v2037, 0.2
        %v2181 = vmul.f32 %v1926, 0.2
        %v2182 = vmul.f32 %v1928, 0.2
        %v2183 = vmul.f32 %v2039, 0.2
        %v2184 = vmul.f32 %v2041, 0.2
        %v2185 = vmul.f32 %v1932, 0.2
        %v2186 = vmul.f32 %v1934, 0.2
        %v2187 = vmul.f32 %v2045, 0.2
        %v2188 = vmul.f32 %v2047, 0.2
        %v2189 = vmul.f32 %v1936, 0.2
        %v2190 = vmul.f32 %v1938, 0.2
        %v2191 = vmul.f32 %v2049, 0.2
        %v2192 = vmul.f32 %v2051, 0.2
        %v2193 = vmul.f32 %v1942, 0.2
        %v2194 = vmul.f32 %v1944, 0.2
        %v2195 = vmul.f32 %v2055, 0.2
        %v2196 = vmul.f32 %v2057, 0.2
        %v2197 = vmul.f32 %v1946, 0.2
        %v2198 = vmul.f32 %v1948, 0.2
        %v2199 = vmul.f32 %v2059, 0.2
        %v2200 = vmul.f32 %v2061, 0.2
        %v2201 = vmul.f32 %v1952, 0.2
        %v2202 = vmul.f32 %v1954, 0.2
        %v2203 = vmul.f32 %v2065, 0.2
        %v2204 = vmul.f32 %v2067, 0.2
        %v2205 = vmul.f32 %v1956, 0.2
        %v2206 = vmul.f32 %v1958, 0.2
        %v2207 = vmul.f32 %v2069, 0.2
        %v2208 = vmul.f32 %v2071, 0.2
        %v2209 = vmul.f32 %v1962, 0.2
        %v2210 = vmul.f32 %v1964, 0.2
        %v2211 = vmul.f32 %v2075, 0.2
        %v2212 = vmul.f32 %v2077, 0.2
        %v2213 = vmul.f32 %v1966, 0.2
        %v2214 = vmul.f32 %v1968, 0.2
        %v2215 = vmul.f32 %v2079, 0.2
        %v2216 = vmul.f32 %v2081, 0.2
        %v2217 = vmul.f32 %v1972, 0.2
        %v2218 = vmul.f32 %v1974, 0.2
        %v2219 = vmul.f32 %v2085, 0.2
        %v2220 = vmul.f32 %v2087, 0.2
        %v2221 = vmul.f32 %v1976, 0.2
        %v2222 = vmul.f32 %v1978, 0.2
        %v2223 = vmul.f32 %v2089, 0.2
        %v2224 = vmul.f32 %v2091, 0.2
        %v2225 = vmul.f32 %v1982, 0.2
        %v2226 = vmul.f32 %v1984, 0.2
        %v2227 = vmul.f32 %v2095, 0.2
        %v2228 = vmul.f32 %v2097, 0.2
        %v2229 = vmul.f32 %v1986, 0.2
        %v2230 = vmul.f32 %v1988, 0.2
        %v2231 = vmul.f32 %v2099, 0.2
        %v2232 = vmul.f32 %v2101, 0.2
        %v2233 = vmul.f32 %v1992, 0.2
        %v2234 = vmul.f32 %v1994, 0.2
        %v2235 = vmul.f32 %v2105, 0.2
        %v2236 = vmul.f32 %v2107, 0.2
        %v2237 = vmul.f32 %v1996, 0.2
        %v2238 = vmul.f32 %v1998, 0.2
        %v2239 = vmul.f32 %v2109, 0.2
        %v2240 = vmul.f32 %v2111, 0.2
        %v2241 = vsel %vm2113, %v1922, %v2177
        %v2242 = vsel %vm2114, %v1924, %v2178
        %v2243 = vsel %vm2115, %v2035, %v2179
        %v2244 = vsel %vm2116, %v2037, %v2180
        %v2245 = vsel %vm2117, %v1926, %v2181
        %v2246 = vsel %vm2118, %v1928, %v2182
        %v2247 = vsel %vm2119, %v2039, %v2183
        %v2248 = vsel %vm2120, %v2041, %v2184
        %v2249 = vsel %vm2121, %v1932, %v2185
        %v2250 = vsel %vm2122, %v1934, %v2186
        %v2251 = vsel %vm2123, %v2045, %v2187
        %v2252 = vsel %vm2124, %v2047, %v2188
        %v2253 = vsel %vm2125, %v1936, %v2189
        %v2254 = vsel %vm2126, %v1938, %v2190
        %v2255 = vsel %vm2127, %v2049, %v2191
        %v2256 = vsel %vm2128, %v2051, %v2192
        %v2257 = vsel %vm2129, %v1942, %v2193
        %v2258 = vsel %vm2130, %v1944, %v2194
        %v2259 = vsel %vm2131, %v2055, %v2195
        %v2260 = vsel %vm2132, %v2057, %v2196
        %v2261 = vsel %vm2133, %v1946, %v2197
        %v2262 = vsel %vm2134, %v1948, %v2198
        %v2263 = vsel %vm2135, %v2059, %v2199
        %v2264 = vsel %vm2136, %v2061, %v2200
        %v2265 = vsel %vm2137, %v1952, %v2201
        %v2266 = vsel %vm2138, %v1954, %v2202
        %v2267 = vsel %vm2139, %v2065, %v2203
        %v2268 = vsel %vm2140, %v2067, %v2204
        %v2269 = vsel %vm2141, %v1956, %v2205
        %v2270 = vsel %vm2142, %v1958, %v2206
        %v2271 = vsel %vm2143, %v2069, %v2207
        %v2272 = vsel %vm2144, %v2071, %v2208
        %v2273 = vsel %vm2145, %v1962, %v2209
        %v2274 = vsel %vm2146, %v1964, %v2210
        %v2275 = vsel %vm2147, %v2075, %v2211
        %v2276 = vsel %vm2148, %v2077, %v2212
        %v2277 = vsel %vm2149, %v1966, %v2213
        %v2278 = vsel %vm2150, %v1968, %v2214
        %v2279 = vsel %vm2151, %v2079, %v2215
        %v2280 = vsel %vm2152, %v2081, %v2216
        %v2281 = vsel %vm2153, %v1972, %v2217
        %v2282 = vsel %vm2154, %v1974, %v2218
        %v2283 = vsel %vm2155, %v2085, %v2219
        %v2284 = vsel %vm2156, %v2087, %v2220
        %v2285 = vsel %vm2157, %v1976, %v2221
        %v2286 = vsel %vm2158, %v1978, %v2222
        %v2287 = vsel %vm2159, %v2089, %v2223
        %v2288 = vsel %vm2160, %v2091, %v2224
        %v2289 = vsel %vm2161, %v1982, %v2225
        %v2290 = vsel %vm2162, %v1984, %v2226
        %v2291 = vsel %vm2163, %v2095, %v2227
        %v2292 = vsel %vm2164, %v2097, %v2228
        %v2293 = vsel %vm2165, %v1986, %v2229
        %v2294 = vsel %vm2166, %v1988, %v2230
        %v2295 = vsel %vm2167, %v2099, %v2231
        %v2296 = vsel %vm2168, %v2101, %v2232
        %v2297 = vsel %vm2169, %v1992, %v2233
        %v2298 = vsel %vm2170, %v1994, %v2234
        %v2299 = vsel %vm2171, %v2105, %v2235
        %v2300 = vsel %vm2172, %v2107, %v2236
        %v2301 = vsel %vm2173, %v1996, %v2237
        %v2302 = vsel %vm2174, %v1998, %v2238
        %v2303 = vsel %vm2175, %v2109, %v2239
        %v2304 = vsel %vm2176, %v2111, %v2240
        %v2305 = vpack.c.bf16 %v2245, %v2241
        %v2306 = vpack.c.bf16 %v2246, %v2242
        %v2307 = vpack.c.bf16 %v2247, %v2243
        %v2308 = vpack.c.bf16 %v2248, %v2244
        %v2309 = vpack.c.bf16 %v2253, %v2249
        %v2310 = vpack.c.bf16 %v2254, %v2250
        %v2311 = vpack.c.bf16 %v2255, %v2251
        %v2312 = vpack.c.bf16 %v2256, %v2252
        %v2313 = vpack.c.bf16 %v2261, %v2257
        %v2314 = vpack.c.bf16 %v2262, %v2258
        %v2315 = vpack.c.bf16 %v2263, %v2259
        %v2316 = vpack.c.bf16 %v2264, %v2260
        %v2317 = vpack.c.bf16 %v2269, %v2265
        %v2318 = vpack.c.bf16 %v2270, %v2266
        %v2319 = vpack.c.bf16 %v2271, %v2267
        %v2320 = vpack.c.bf16 %v2272, %v2268
        %v2321 = vpack.c.bf16 %v2277, %v2273
        %v2322 = vpack.c.bf16 %v2278, %v2274
        %v2323 = vpack.c.bf16 %v2279, %v2275
        %v2324 = vpack.c.bf16 %v2280, %v2276
        %v2325 = vpack.c.bf16 %v2285, %v2281
        %v2326 = vpack.c.bf16 %v2286, %v2282
        %v2327 = vpack.c.bf16 %v2287, %v2283
        %v2328 = vpack.c.bf16 %v2288, %v2284
        %v2329 = vpack.c.bf16 %v2293, %v2289
        %v2330 = vpack.c.bf16 %v2294, %v2290
        %v2331 = vpack.c.bf16 %v2295, %v2291
        %v2332 = vpack.c.bf16 %v2296, %v2292
        %v2333 = vpack.c.bf16 %v2301, %v2297
        %v2334 = vpack.c.bf16 %v2302, %v2298
        %v2335 = vpack.c.bf16 %v2303, %v2299
        %v2336 = vpack.c.bf16 %v2304, %v2300
        %v2337 = vld [vmem:[%s7] sm:$0xf]
        %v2338 = vld [vmem:[%s7 + $0x4] sm:$0xf]
        %v2339 = vld [vmem:[%s7 + $0x8] sm:$0xf]
        %v2340 = vld [vmem:[%s7 + $0xc] sm:$0xf]
        %v2341 = vld [vmem:[%s7 + $0x10] sm:$0xf]
        %v2342 = vld [vmem:[%s7 + $0x14] sm:$0xf]
        %v2343 = vld [vmem:[%s7 + $0x18] sm:$0xf]
        %v2344 = vld [vmem:[%s7 + $0x1c] sm:$0xf]
        %v2345 = vld [vmem:[%s7 + $0x20] sm:$0xf]
        %v2346 = vld [vmem:[%s7 + $0x24] sm:$0xf]
        %v2347 = vld [vmem:[%s7 + $0x28] sm:$0xf]
        %v2348 = vld [vmem:[%s7 + $0x2c] sm:$0xf]
        %v2349 = vld [vmem:[%s7 + $0x30] sm:$0xf]
        %v2350 = vld [vmem:[%s7 + $0x34] sm:$0xf]
        %v2351 = vld [vmem:[%s7 + $0x38] sm:$0xf]
        %v2352 = vld [vmem:[%s7 + $0x3c] sm:$0xf]
        %v2353 = vld [vmem:[%s7 + $0x40] sm:$0xf]
        %v2354 = vld [vmem:[%s7 + $0x44] sm:$0xf]
        %v2355 = vld [vmem:[%s7 + $0x48] sm:$0xf]
        %v2356 = vld [vmem:[%s7 + $0x4c] sm:$0xf]
        %v2357 = vld [vmem:[%s7 + $0x50] sm:$0xf]
        %v2358 = vld [vmem:[%s7 + $0x54] sm:$0xf]
        %v2359 = vld [vmem:[%s7 + $0x58] sm:$0xf]
        %v2360 = vld [vmem:[%s7 + $0x5c] sm:$0xf]
        %v2361 = vld [vmem:[%s7 + $0x60] sm:$0xf]
        %v2362 = vld [vmem:[%s7 + $0x64] sm:$0xf]
        %v2363 = vld [vmem:[%s7 + $0x68] sm:$0xf]
        %v2364 = vld [vmem:[%s7 + $0x6c] sm:$0xf]
        %v2365 = vld [vmem:[%s7 + $0x70] sm:$0xf]
        %v2366 = vld [vmem:[%s7 + $0x74] sm:$0xf]
        %v2367 = vld [vmem:[%s7 + $0x78] sm:$0xf]
        %v2368 = vld [vmem:[%s7 + $0x7c] sm:$0xf]
        %v2369 = vld [vmem:[%s7 + $0x80] sm:$0xf]
        %v2370 = vld [vmem:[%s7 + $0x84] sm:$0xf]
        %v2371 = vld [vmem:[%s7 + $0x88] sm:$0xf]
        %v2372 = vld [vmem:[%s7 + $0x8c] sm:$0xf]
        %v2373 = vld [vmem:[%s7 + $0x90] sm:$0xf]
        %v2374 = vld [vmem:[%s7 + $0x94] sm:$0xf]
        %v2375 = vld [vmem:[%s7 + $0x98] sm:$0xf]
        %v2376 = vld [vmem:[%s7 + $0x9c] sm:$0xf]
        %v2377 = vld [vmem:[%s7 + $0xa0] sm:$0xf]
        %v2378 = vld [vmem:[%s7 + $0xa4] sm:$0xf]
        %v2379 = vld [vmem:[%s7 + $0xa8] sm:$0xf]
        %v2380 = vld [vmem:[%s7 + $0xac] sm:$0xf]
        %v2381 = vld [vmem:[%s7 + $0xb0] sm:$0xf]
        %v2382 = vld [vmem:[%s7 + $0xb4] sm:$0xf]
        %v2383 = vld [vmem:[%s7 + $0xb8] sm:$0xf]
        %v2384 = vld [vmem:[%s7 + $0xbc] sm:$0xf]
        %v2385 = vld [vmem:[%s7 + $0xc0] sm:$0xf]
        %v2386 = vld [vmem:[%s7 + $0xc4] sm:$0xf]
        %v2387 = vld [vmem:[%s7 + $0xc8] sm:$0xf]
        %v2388 = vld [vmem:[%s7 + $0xcc] sm:$0xf]
        %v2389 = vld [vmem:[%s7 + $0xd0] sm:$0xf]
        %v2390 = vld [vmem:[%s7 + $0xd4] sm:$0xf]
        %v2391 = vld [vmem:[%s7 + $0xd8] sm:$0xf]
        %v2392 = vld [vmem:[%s7 + $0xdc] sm:$0xf]
        %v2393 = vld [vmem:[%s7 + $0xe0] sm:$0xf]
        %v2394 = vld [vmem:[%s7 + $0xe4] sm:$0xf]
        %v2395 = vld [vmem:[%s7 + $0xe8] sm:$0xf]
        %v2396 = vld [vmem:[%s7 + $0xec] sm:$0xf]
        %v2397 = vld [vmem:[%s7 + $0xf0] sm:$0xf]
        %v2398 = vld [vmem:[%s7 + $0xf4] sm:$0xf]
        %v2399 = vld [vmem:[%s7 + $0xf8] sm:$0xf]
        %v2400 = vld [vmem:[%s7 + $0xfc] sm:$0xf]
        %v2465 = vunpack.c.l.b16 %v2337
        %v2466 = vunpack.c.l.b16 %v2338
        %v2467 = vunpack.c.l.b16 %v2339
        %v2468 = vunpack.c.l.b16 %v2340
        %v2469 = vunpack.c.l.b16 %v2341
        %v2470 = vunpack.c.l.b16 %v2342
        %v2471 = vunpack.c.l.b16 %v2343
        %v2472 = vunpack.c.l.b16 %v2344
        %v2473 = vunpack.c.l.b16 %v2345
        %v2474 = vunpack.c.l.b16 %v2346
        %v2475 = vunpack.c.l.b16 %v2347
        %v2476 = vunpack.c.l.b16 %v2348
        %v2477 = vunpack.c.l.b16 %v2349
        %v2478 = vunpack.c.l.b16 %v2350
        %v2479 = vunpack.c.l.b16 %v2351
        %v2480 = vunpack.c.l.b16 %v2352
        %v2481 = vunpack.c.l.b16 %v2353
        %v2482 = vunpack.c.l.b16 %v2354
        %v2483 = vunpack.c.l.b16 %v2355
        %v2484 = vunpack.c.l.b16 %v2356
        %v2485 = vunpack.c.l.b16 %v2357
        %v2486 = vunpack.c.l.b16 %v2358
        %v2487 = vunpack.c.l.b16 %v2359
        %v2488 = vunpack.c.l.b16 %v2360
        %v2489 = vunpack.c.l.b16 %v2361
        %v2490 = vunpack.c.l.b16 %v2362
        %v2491 = vunpack.c.l.b16 %v2363
        %v2492 = vunpack.c.l.b16 %v2364
        %v2493 = vunpack.c.l.b16 %v2365
        %v2494 = vunpack.c.l.b16 %v2366
        %v2495 = vunpack.c.l.b16 %v2367
        %v2496 = vunpack.c.l.b16 %v2368
        %v2497 = vunpack.c.l.b16 %v2369
        %v2498 = vunpack.c.l.b16 %v2370
        %v2499 = vunpack.c.l.b16 %v2371
        %v2500 = vunpack.c.l.b16 %v2372
        %v2501 = vunpack.c.l.b16 %v2373
        %v2502 = vunpack.c.l.b16 %v2374
        %v2503 = vunpack.c.l.b16 %v2375
        %v2504 = vunpack.c.l.b16 %v2376
        %v2505 = vunpack.c.l.b16 %v2377
        %v2506 = vunpack.c.l.b16 %v2378
        %v2507 = vunpack.c.l.b16 %v2379
        %v2508 = vunpack.c.l.b16 %v2380
        %v2509 = vunpack.c.l.b16 %v2381
        %v2510 = vunpack.c.l.b16 %v2382
        %v2511 = vunpack.c.l.b16 %v2383
        %v2512 = vunpack.c.l.b16 %v2384
        %v2513 = vunpack.c.l.b16 %v2385
        %v2514 = vunpack.c.l.b16 %v2386
        %v2515 = vunpack.c.l.b16 %v2387
        %v2516 = vunpack.c.l.b16 %v2388
        %v2517 = vunpack.c.l.b16 %v2389
        %v2518 = vunpack.c.l.b16 %v2390
        %v2519 = vunpack.c.l.b16 %v2391
        %v2520 = vunpack.c.l.b16 %v2392
        %v2521 = vunpack.c.l.b16 %v2393
        %v2522 = vunpack.c.l.b16 %v2394
        %v2523 = vunpack.c.l.b16 %v2395
        %v2524 = vunpack.c.l.b16 %v2396
        %v2525 = vunpack.c.l.b16 %v2397
        %v2526 = vunpack.c.l.b16 %v2398
        %v2527 = vunpack.c.l.b16 %v2399
        %v2528 = vunpack.c.l.b16 %v2400
        %v2529 = vpack.c.b16 %v2466, %v2465
        %v2530 = vpack.c.b16 %v2468, %v2467
        %v2531 = vpack.c.b16 %v2470, %v2469
        %v2532 = vpack.c.b16 %v2472, %v2471
        %v2533 = vpack.c.b16 %v2474, %v2473
        %v2534 = vpack.c.b16 %v2476, %v2475
        %v2535 = vpack.c.b16 %v2478, %v2477
        %v2536 = vpack.c.b16 %v2480, %v2479
        %v2537 = vpack.c.b16 %v2482, %v2481
        %v2538 = vpack.c.b16 %v2484, %v2483
        %v2539 = vpack.c.b16 %v2486, %v2485
        %v2540 = vpack.c.b16 %v2488, %v2487
        %v2541 = vpack.c.b16 %v2490, %v2489
        %v2542 = vpack.c.b16 %v2492, %v2491
        %v2543 = vpack.c.b16 %v2494, %v2493
        %v2544 = vpack.c.b16 %v2496, %v2495
        %v2545 = vpack.c.b16 %v2498, %v2497
        %v2546 = vpack.c.b16 %v2500, %v2499
        %v2547 = vpack.c.b16 %v2502, %v2501
        %v2548 = vpack.c.b16 %v2504, %v2503
        %v2549 = vpack.c.b16 %v2506, %v2505
        %v2550 = vpack.c.b16 %v2508, %v2507
        %v2551 = vpack.c.b16 %v2510, %v2509
        %v2552 = vpack.c.b16 %v2512, %v2511
        %v2553 = vpack.c.b16 %v2514, %v2513
        %v2554 = vpack.c.b16 %v2516, %v2515
        %v2555 = vpack.c.b16 %v2518, %v2517
        %v2556 = vpack.c.b16 %v2520, %v2519
        %v2557 = vpack.c.b16 %v2522, %v2521
        %v2558 = vpack.c.b16 %v2524, %v2523
        %v2559 = vpack.c.b16 %v2526, %v2525
        %v2560 = vpack.c.b16 %v2528, %v2527
        %2593 = vmatprep.subr.bf16.mxu0 0
        %2594 = vmatpush1.bf16.msra.mxu0 %v2529
        %2595 = vmatprep.subr.bf16.mxu0 0
        %2596 = vmatpush1.bf16.msra.mxu0 %v2530
        %2597 = vmatprep.subr.bf16.mxu0 0
        %2598 = vmatpush1.bf16.msra.mxu0 %v2531
        %2599 = vmatprep.subr.bf16.mxu0 0
        %2600 = vmatpush1.bf16.msra.mxu0 %v2532
        %2601 = vmatprep.subr.bf16.mxu0 0
        %2602 = vmatpush1.bf16.msra.mxu0 %v2533
        %2603 = vmatprep.subr.bf16.mxu0 0
        %2604 = vmatpush1.bf16.msra.mxu0 %v2534
        %2605 = vmatprep.subr.bf16.mxu0 0
        %2606 = vmatpush1.bf16.msra.mxu0 %v2535
        %2607 = vmatprep.subr.bf16.mxu0 0
        %2608 = vmatpush1.bf16.msra.mxu0 %v2536
        %2609 = vmatprep.subr.bf16.mxu0 0
        %2610 = vmatpush1.bf16.msra.mxu0 %v2537
        %2611 = vmatprep.subr.bf16.mxu0 0
        %2612 = vmatpush1.bf16.msra.mxu0 %v2538
        %2613 = vmatprep.subr.bf16.mxu0 0
        %2614 = vmatpush1.bf16.msra.mxu0 %v2539
        %2615 = vmatprep.subr.bf16.mxu0 0
        %2616 = vmatpush1.bf16.msra.mxu0 %v2540
        %2617 = vmatprep.subr.bf16.mxu0 0
        %2618 = vmatpush1.bf16.msra.mxu0 %v2541
        %2619 = vmatprep.subr.bf16.mxu0 0
        %2620 = vmatpush1.bf16.msra.mxu0 %v2542
        %2621 = vmatprep.subr.bf16.mxu0 0
        %2622 = vmatpush1.bf16.msra.mxu0 %v2543
        %2623 = vmatprep.subr.bf16.mxu0 0
        %2624 = vmatpush1.bf16.msra.mxu0 %v2544
        %2625 = vmatprep.mubr.bf16.mxu0 %v2306
        %2626 = vmatmul.mubr.bf16.gmra.mrb[0].mxu0 %v2305
        %v2627 = vpop.f32.mrb[0].mxu0
        %v2628 = vadd.f32 0.0, %v2627
        %v2629 = vpop.f32.mrb[0].mxu0
        %v2630 = vpop.f32.mrb[0].mxu0
        %v2631 = vadd.f32 0.0, %v2630
        %v2632 = vpop.f32.mrb[0].mxu0
        %2633 = vmatprep.mubr.bf16.mxu0 %v2310
        %2634 = vmatmul.mubr.bf16.gmra.mrb[0].mxu0 %v2309
        %v2635 = vpop.f32.mrb[0].mxu0
        %v2636 = vadd.f32 0.0, %v2635
        %v2637 = vpop.f32.mrb[0].mxu0
        %v2638 = vpop.f32.mrb[0].mxu0
        %v2639 = vadd.f32 0.0, %v2638
        %v2640 = vpop.f32.mrb[0].mxu0
        %2641 = vmatprep.mubr.bf16.mxu0 %v2314
        %2642 = vmatmul.mubr.bf16.gmra.mrb[0].mxu0 %v2313
        %v2643 = vpop.f32.mrb[0].mxu0
        %v2644 = vadd.f32 0.0, %v2643
        %v2645 = vpop.f32.mrb[0].mxu0
        %v2646 = vpop.f32.mrb[0].mxu0
        %v2647 = vadd.f32 0.0, %v2646
        %v2648 = vpop.f32.mrb[0].mxu0
        %2649 = vmatprep.mubr.bf16.mxu0 %v2318
        %2650 = vmatmul.mubr.bf16.gmra.mrb[0].mxu0 %v2317
        %v2651 = vpop.f32.mrb[0].mxu0
        %v2652 = vadd.f32 0.0, %v2651
        %v2653 = vpop.f32.mrb[0].mxu0
        %v2654 = vpop.f32.mrb[0].mxu0
        %v2655 = vadd.f32 0.0, %v2654
        %v2656 = vpop.f32.mrb[0].mxu0
        %2657 = vmatprep.mubr.bf16.mxu0 %v2322
        %2658 = vmatmul.mubr.bf16.gmra.mrb[0].mxu0 %v2321
        %v2659 = vpop.f32.mrb[0].mxu0
        %v2660 = vadd.f32 0.0, %v2659
        %v2661 = vpop.f32.mrb[0].mxu0
        %v2662 = vpop.f32.mrb[0].mxu0
        %v2663 = vadd.f32 0.0, %v2662
        %v2664 = vpop.f32.mrb[0].mxu0
        %2665 = vmatprep.mubr.bf16.mxu0 %v2326
        %2666 = vmatmul.mubr.bf16.gmra.mrb[0].mxu0 %v2325
        %v2667 = vpop.f32.mrb[0].mxu0
        %v2668 = vadd.f32 0.0, %v2667
        %v2669 = vpop.f32.mrb[0].mxu0
        %v2670 = vpop.f32.mrb[0].mxu0
        %v2671 = vadd.f32 0.0, %v2670
        %v2672 = vpop.f32.mrb[0].mxu0
        %2673 = vmatprep.mubr.bf16.mxu0 %v2330
        %2674 = vmatmul.mubr.bf16.gmra.mrb[0].mxu0 %v2329
        %v2675 = vpop.f32.mrb[0].mxu0
        %v2676 = vadd.f32 0.0, %v2675
        %v2677 = vpop.f32.mrb[0].mxu0
        %v2678 = vpop.f32.mrb[0].mxu0
        %v2679 = vadd.f32 0.0, %v2678
        %v2680 = vpop.f32.mrb[0].mxu0
        %2681 = vmatprep.mubr.bf16.mxu0 %v2334
        %2682 = vmatmul.mubr.bf16.gmra.mrb[0].mxu0 %v2333
        %v2683 = vpop.f32.mrb[0].mxu0
        %v2684 = vadd.f32 0.0, %v2683
        %v2685 = vpop.f32.mrb[0].mxu0
        %v2686 = vpop.f32.mrb[0].mxu0
        %v2687 = vadd.f32 0.0, %v2686
        %v2688 = vpop.f32.mrb[0].mxu0
        %2689 = vdwg.mxu0
        %2690 = vmatprep.subr.bf16.mxu0 0
        %2691 = vmatpush1.bf16.msra.mxu0 %v2545
        %2692 = vmatprep.subr.bf16.mxu0 0
        %2693 = vmatpush1.bf16.msra.mxu0 %v2546
        %2694 = vmatprep.subr.bf16.mxu0 0
        %2695 = vmatpush1.bf16.msra.mxu0 %v2547
        %2696 = vmatprep.subr.bf16.mxu0 0
        %2697 = vmatpush1.bf16.msra.mxu0 %v2548
        %2698 = vmatprep.subr.bf16.mxu0 0
        %2699 = vmatpush1.bf16.msra.mxu0 %v2549
        %2700 = vmatprep.subr.bf16.mxu0 0
        %2701 = vmatpush1.bf16.msra.mxu0 %v2550
        %2702 = vmatprep.subr.bf16.mxu0 0
        %2703 = vmatpush1.bf16.msra.mxu0 %v2551
        %2704 = vmatprep.subr.bf16.mxu0 0
        %2705 = vmatpush1.bf16.msra.mxu0 %v2552
        %2706 = vmatprep.subr.bf16.mxu0 0
        %2707 = vmatpush1.bf16.msra.mxu0 %v2553
        %2708 = vmatprep.subr.bf16.mxu0 0
        %2709 = vmatpush1.bf16.msra.mxu0 %v2554
        %2710 = vmatprep.subr.bf16.mxu0 0
        %2711 = vmatpush1.bf16.msra.mxu0 %v2555
        %2712 = vmatprep.subr.bf16.mxu0 0
        %2713 = vmatpush1.bf16.msra.mxu0 %v2556
        %2714 = vmatprep.subr.bf16.mxu0 0
        %2715 = vmatpush1.bf16.msra.mxu0 %v2557
        %2716 = vmatprep.subr.bf16.mxu0 0
        %2717 = vmatpush1.bf16.msra.mxu0 %v2558
        %2718 = vmatprep.subr.bf16.mxu0 0
        %2719 = vmatpush1.bf16.msra.mxu0 %v2559
        %2720 = vmatprep.subr.bf16.mxu0 0
        %2721 = vmatpush1.bf16.msra.mxu0 %v2560
        %2722 = vmatprep.mubr.bf16.mxu0 %v2308
        %2723 = vmatmul.mubr.bf16.gmra.mrb[0].mxu0 %v2307
        %v2724 = vpop.f32.mrb[0].mxu0
        %v2725 = vadd.f32 %v2628, %v2724
        %v2726 = vpop.f32.mrb[0].mxu0
        %v2727 = vpop.f32.mrb[0].mxu0
        %v2728 = vadd.f32 %v2631, %v2727
        %v2729 = vpop.f32.mrb[0].mxu0
        %2730 = vmatprep.mubr.bf16.mxu0 %v2312
        %2731 = vmatmul.mubr.bf16.gmra.mrb[0].mxu0 %v2311
        %v2732 = vpop.f32.mrb[0].mxu0
        %v2733 = vadd.f32 %v2636, %v2732
        %v2734 = vpop.f32.mrb[0].mxu0
        %v2735 = vpop.f32.mrb[0].mxu0
        %v2736 = vadd.f32 %v2639, %v2735
        %v2737 = vpop.f32.mrb[0].mxu0
        %2738 = vmatprep.mubr.bf16.mxu0 %v2316
        %2739 = vmatmul.mubr.bf16.gmra.mrb[0].mxu0 %v2315
        %v2740 = vpop.f32.mrb[0].mxu0
        %v2741 = vadd.f32 %v2644, %v2740
        %v2742 = vpop.f32.mrb[0].mxu0
        %v2743 = vpop.f32.mrb[0].mxu0
        %v2744 = vadd.f32 %v2647, %v2743
        %v2745 = vpop.f32.mrb[0].mxu0
        %2746 = vmatprep.mubr.bf16.mxu0 %v2320
        %2747 = vmatmul.mubr.bf16.gmra.mrb[0].mxu0 %v2319
        %v2748 = vpop.f32.mrb[0].mxu0
        %v2749 = vadd.f32 %v2652, %v2748
        %v2750 = vpop.f32.mrb[0].mxu0
        %v2751 = vpop.f32.mrb[0].mxu0
        %v2752 = vadd.f32 %v2655, %v2751
        %v2753 = vpop.f32.mrb[0].mxu0
        %2754 = vmatprep.mubr.bf16.mxu0 %v2324
        %2755 = vmatmul.mubr.bf16.gmra.mrb[0].mxu0 %v2323
        %v2756 = vpop.f32.mrb[0].mxu0
        %v2757 = vadd.f32 %v2660, %v2756
        %v2758 = vpop.f32.mrb[0].mxu0
        %v2759 = vpop.f32.mrb[0].mxu0
        %v2760 = vadd.f32 %v2663, %v2759
        %v2761 = vpop.f32.mrb[0].mxu0
        %2762 = vmatprep.mubr.bf16.mxu0 %v2328
        %2763 = vmatmul.mubr.bf16.gmra.mrb[0].mxu0 %v2327
        %v2764 = vpop.f32.mrb[0].mxu0
        %v2765 = vadd.f32 %v2668, %v2764
        %v2766 = vpop.f32.mrb[0].mxu0
        %v2767 = vpop.f32.mrb[0].mxu0
        %v2768 = vadd.f32 %v2671, %v2767
        %v2769 = vpop.f32.mrb[0].mxu0
        %2770 = vmatprep.mubr.bf16.mxu0 %v2332
        %2771 = vmatmul.mubr.bf16.gmra.mrb[0].mxu0 %v2331
        %v2772 = vpop.f32.mrb[0].mxu0
        %v2773 = vadd.f32 %v2676, %v2772
        %v2774 = vpop.f32.mrb[0].mxu0
        %v2775 = vpop.f32.mrb[0].mxu0
        %v2776 = vadd.f32 %v2679, %v2775
        %v2777 = vpop.f32.mrb[0].mxu0
        %2778 = vmatprep.mubr.bf16.mxu0 %v2336
        %2779 = vmatmul.mubr.bf16.gmra.mrb[0].mxu0 %v2335
        %v2780 = vpop.f32.mrb[0].mxu0
        %v2781 = vadd.f32 %v2684, %v2780
        %v2782 = vpop.f32.mrb[0].mxu0
        %v2783 = vpop.f32.mrb[0].mxu0
        %v2784 = vadd.f32 %v2687, %v2783
        %v2785 = vpop.f32.mrb[0].mxu0
        %2786 = vdwg.mxu0
        %v2787 = vadd.f32 %v1649, %v2725
        %v2788 = vadd.f32 %v1650, %v2728
        %v2789 = vadd.f32 %v1651, %v2733
        %v2790 = vadd.f32 %v1652, %v2736
        %v2791 = vadd.f32 %v1653, %v2741
        %v2792 = vadd.f32 %v1654, %v2744
        %v2793 = vadd.f32 %v1655, %v2749
        %v2794 = vadd.f32 %v1656, %v2752
        %v2795 = vadd.f32 %v1657, %v2757
        %v2796 = vadd.f32 %v1658, %v2760
        %v2797 = vadd.f32 %v1659, %v2765
        %v2798 = vadd.f32 %v1660, %v2768
        %v2799 = vadd.f32 %v1661, %v2773
        %v2800 = vadd.f32 %v1662, %v2776
        %v2801 = vadd.f32 %v1663, %v2781
        %v2802 = vadd.f32 %v1664, %v2784
        %v2803 = vld [vmem:[%s8] sm:$0x1]
        %v2805 = vlaneseq
        %v2806 = vshrl.u32 %v2805, 7
        %v2807 = vsub.s32 0, %v2806
        %v2808 = vrot.slane %v2803, %v2807
        %v2810 = vadd.f32 %v2787, %v2808
        %v2811 = vadd.f32 %v2788, %v2808
        %v2812 = vadd.f32 %v2789, %v2808
        %v2813 = vadd.f32 %v2790, %v2808
        %v2814 = vadd.f32 %v2791, %v2808
        %v2815 = vadd.f32 %v2792, %v2808
        %v2816 = vadd.f32 %v2793, %v2808
        %v2817 = vadd.f32 %v2794, %v2808
        %v2818 = vadd.f32 %v2795, %v2808
        %v2819 = vadd.f32 %v2796, %v2808
        %v2820 = vadd.f32 %v2797, %v2808
        %v2821 = vadd.f32 %v2798, %v2808
        %v2822 = vadd.f32 %v2799, %v2808
        %v2823 = vadd.f32 %v2800, %v2808
        %v2824 = vadd.f32 %v2801, %v2808
        %v2825 = vadd.f32 %v2802, %v2808
        %vm2826 = vcmp.gt.f32.partialorder %v2810, 0.0
        %vm2827 = vcmp.gt.f32.partialorder %v2811, 0.0
        %vm2828 = vcmp.gt.f32.partialorder %v2812, 0.0
        %vm2829 = vcmp.gt.f32.partialorder %v2813, 0.0
        %vm2830 = vcmp.gt.f32.partialorder %v2814, 0.0
        %vm2831 = vcmp.gt.f32.partialorder %v2815, 0.0
        %vm2832 = vcmp.gt.f32.partialorder %v2816, 0.0
        %vm2833 = vcmp.gt.f32.partialorder %v2817, 0.0
        %vm2834 = vcmp.gt.f32.partialorder %v2818, 0.0
        %vm2835 = vcmp.gt.f32.partialorder %v2819, 0.0
        %vm2836 = vcmp.gt.f32.partialorder %v2820, 0.0
        %vm2837 = vcmp.gt.f32.partialorder %v2821, 0.0
        %vm2838 = vcmp.gt.f32.partialorder %v2822, 0.0
        %vm2839 = vcmp.gt.f32.partialorder %v2823, 0.0
        %vm2840 = vcmp.gt.f32.partialorder %v2824, 0.0
        %vm2841 = vcmp.gt.f32.partialorder %v2825, 0.0
        %v2842 = vmul.f32 %v2810, 0.2
        %v2843 = vmul.f32 %v2811, 0.2
        %v2844 = vmul.f32 %v2812, 0.2
        %v2845 = vmul.f32 %v2813, 0.2
        %v2846 = vmul.f32 %v2814, 0.2
        %v2847 = vmul.f32 %v2815, 0.2
        %v2848 = vmul.f32 %v2816, 0.2
        %v2849 = vmul.f32 %v2817, 0.2
        %v2850 = vmul.f32 %v2818, 0.2
        %v2851 = vmul.f32 %v2819, 0.2
        %v2852 = vmul.f32 %v2820, 0.2
        %v2853 = vmul.f32 %v2821, 0.2
        %v2854 = vmul.f32 %v2822, 0.2
        %v2855 = vmul.f32 %v2823, 0.2
        %v2856 = vmul.f32 %v2824, 0.2
        %v2857 = vmul.f32 %v2825, 0.2
        %v2858 = vsel %vm2826, %v2810, %v2842
        %v2859 = vsel %vm2827, %v2811, %v2843
        %v2860 = vsel %vm2828, %v2812, %v2844
        %v2861 = vsel %vm2829, %v2813, %v2845
        %v2862 = vsel %vm2830, %v2814, %v2846
        %v2863 = vsel %vm2831, %v2815, %v2847
        %v2864 = vsel %vm2832, %v2816, %v2848
        %v2865 = vsel %vm2833, %v2817, %v2849
        %v2866 = vsel %vm2834, %v2818, %v2850
        %v2867 = vsel %vm2835, %v2819, %v2851
        %v2868 = vsel %vm2836, %v2820, %v2852
        %v2869 = vsel %vm2837, %v2821, %v2853
        %v2870 = vsel %vm2838, %v2822, %v2854
        %v2871 = vsel %vm2839, %v2823, %v2855
        %v2872 = vsel %vm2840, %v2824, %v2856
        %v2873 = vsel %vm2841, %v2825, %v2857
        %v2874 = vpack.c.bf16 %v2859, %v2858
        %v2875 = vpack.c.bf16 %v2861, %v2860
        %v2876 = vpack.c.bf16 %v2863, %v2862
        %v2877 = vpack.c.bf16 %v2865, %v2864
        %v2878 = vpack.c.bf16 %v2867, %v2866
        %v2879 = vpack.c.bf16 %v2869, %v2868
        %v2880 = vpack.c.bf16 %v2871, %v2870
        %v2881 = vpack.c.bf16 %v2873, %v2872
        %v2882 = vld [vmem:[#allocation6] sm:$0xf]
        %v2883 = vld [vmem:[#allocation6 + $0x4] sm:$0xf]
        %v2884 = vld [vmem:[#allocation6 + $0x8] sm:$0xf]
        %v2885 = vld [vmem:[#allocation6 + $0xc] sm:$0xf]
        %v2886 = vld [vmem:[#allocation6 + $0x10] sm:$0xf]
        %v2887 = vld [vmem:[#allocation6 + $0x14] sm:$0xf]
        %v2888 = vld [vmem:[#allocation6 + $0x18] sm:$0xf]
        %v2889 = vld [vmem:[#allocation6 + $0x1c] sm:$0xf]
        %v2890 = vld [vmem:[#allocation6 + $0x20] sm:$0xf]
        %v2891 = vld [vmem:[#allocation6 + $0x24] sm:$0xf]
        %v2892 = vld [vmem:[#allocation6 + $0x28] sm:$0xf]
        %v2893 = vld [vmem:[#allocation6 + $0x2c] sm:$0xf]
        %v2894 = vld [vmem:[#allocation6 + $0x30] sm:$0xf]
        %v2895 = vld [vmem:[#allocation6 + $0x34] sm:$0xf]
        %v2896 = vld [vmem:[#allocation6 + $0x38] sm:$0xf]
        %v2897 = vld [vmem:[#allocation6 + $0x3c] sm:$0xf]
        %v2898 = vld [vmem:[%s10] sm:$0x1]
        %v2900 = vlaneseq
        %v2901 = vshrl.u32 %v2900, 7
        %v2902 = vsub.s32 0, %v2901
        %v2903 = vrot.slane %v2898, %v2902
        %v2921 = vunpack.c.l.b16 %v2882
        %v2922 = vunpack.c.l.b16 %v2883
        %v2923 = vunpack.c.l.b16 %v2884
        %v2924 = vunpack.c.l.b16 %v2885
        %v2925 = vunpack.c.l.b16 %v2886
        %v2926 = vunpack.c.l.b16 %v2887
        %v2927 = vunpack.c.l.b16 %v2888
        %v2928 = vunpack.c.l.b16 %v2889
        %v2929 = vunpack.c.l.b16 %v2890
        %v2930 = vunpack.c.l.b16 %v2891
        %v2931 = vunpack.c.l.b16 %v2892
        %v2932 = vunpack.c.l.b16 %v2893
        %v2933 = vunpack.c.l.b16 %v2894
        %v2934 = vunpack.c.l.b16 %v2895
        %v2935 = vunpack.c.l.b16 %v2896
        %v2936 = vunpack.c.l.b16 %v2897
        %v2937 = vpack.c.b16 %v2922, %v2921
        %v2938 = vpack.c.b16 %v2924, %v2923
        %v2939 = vpack.c.b16 %v2926, %v2925
        %v2940 = vpack.c.b16 %v2928, %v2927
        %v2941 = vpack.c.b16 %v2930, %v2929
        %v2942 = vpack.c.b16 %v2932, %v2931
        %v2943 = vpack.c.b16 %v2934, %v2933
        %v2944 = vpack.c.b16 %v2936, %v2935
        %2953 = vmatprep.subr.bf16.mxu0 0
        %2954 = vmatpush1.bf16.msra.mxu0 %v2937
        %2955 = vmatprep.subr.bf16.mxu0 0
        %2956 = vmatpush1.bf16.msra.mxu0 %v2938
        %2957 = vmatprep.subr.bf16.mxu0 0
        %2958 = vmatpush1.bf16.msra.mxu0 %v2939
        %2959 = vmatprep.subr.bf16.mxu0 0
        %2960 = vmatpush1.bf16.msra.mxu0 %v2940
        %2961 = vmatprep.subr.bf16.mxu0 0
        %2962 = vmatpush1.bf16.msra.mxu0 %v2941
        %2963 = vmatprep.subr.bf16.mxu0 0
        %2964 = vmatpush1.bf16.msra.mxu0 %v2942
        %2965 = vmatprep.subr.bf16.mxu0 0
        %2966 = vmatpush1.bf16.msra.mxu0 %v2943
        %2967 = vmatprep.subr.bf16.mxu0 0
        %2968 = vmatpush1.bf16.msra.mxu0 %v2944
        %2969 = vmatprep.subr.bf16.mxu0 0
        %2970 = vmatpush1.bf16.msra.mxu0 0
        %2971 = vmatprep.subr.bf16.mxu0 0
        %2972 = vmatpush1.bf16.msra.mxu0 0
        %2973 = vmatprep.subr.bf16.mxu0 0
        %2974 = vmatpush1.bf16.msra.mxu0 0
        %2975 = vmatprep.subr.bf16.mxu0 0
        %2976 = vmatpush1.bf16.msra.mxu0 0
        %2977 = vmatprep.subr.bf16.mxu0 0
        %2978 = vmatpush1.bf16.msra.mxu0 0
        %2979 = vmatprep.subr.bf16.mxu0 0
        %2980 = vmatpush1.bf16.msra.mxu0 0
        %2981 = vmatprep.subr.bf16.mxu0 0
        %2982 = vmatpush1.bf16.msra.mxu0 0
        %2983 = vmatprep.subr.bf16.mxu0 0
        %2984 = vmatpush1.bf16.msra.mxu0 0
        %2985 = vmatprep.mubr.bf16.mxu0 0
        %2986 = vmatmul.mubr.bf16.gmra.mrb[0].mxu0 %v2874
        %v2987 = vpop.f32.mrb[0].mxu0
        %v2988 = vadd.f32 %v2903, %v2987
        %v2989 = vpop.f32.mrb[0].mxu0
        %v2990 = vpop.f32.mrb[0].mxu0
        %v2991 = vadd.f32 %v2903, %v2990
        %v2992 = vpop.f32.mrb[0].mxu0
        %2993 = vmatprep.mubr.bf16.mxu0 0
        %2994 = vmatmul.mubr.bf16.gmra.mrb[0].mxu0 %v2875
        %v2995 = vpop.f32.mrb[0].mxu0
        %v2996 = vadd.f32 %v2903, %v2995
        %v2997 = vpop.f32.mrb[0].mxu0
        %v2998 = vpop.f32.mrb[0].mxu0
        %v2999 = vadd.f32 %v2903, %v2998
        %v3000 = vpop.f32.mrb[0].mxu0
        %3001 = vmatprep.mubr.bf16.mxu0 0
        %3002 = vmatmul.mubr.bf16.gmra.mrb[0].mxu0 %v2876
        %v3003 = vpop.f32.mrb[0].mxu0
        %v3004 = vadd.f32 %v2903, %v3003
        %v3005 = vpop.f32.mrb[0].mxu0
        %v3006 = vpop.f32.mrb[0].mxu0
        %v3007 = vadd.f32 %v2903, %v3006
        %v3008 = vpop.f32.mrb[0].mxu0
        %3009 = vmatprep.mubr.bf16.mxu0 0
        %3010 = vmatmul.mubr.bf16.gmra.mrb[0].mxu0 %v2877
        %v3011 = vpop.f32.mrb[0].mxu0
        %v3012 = vadd.f32 %v2903, %v3011
        %v3013 = vpop.f32.mrb[0].mxu0
        %v3014 = vpop.f32.mrb[0].mxu0
        %v3015 = vadd.f32 %v2903, %v3014
        %v3016 = vpop.f32.mrb[0].mxu0
        %3017 = vmatprep.mubr.bf16.mxu0 0
        %3018 = vmatmul.mubr.bf16.gmra.mrb[0].mxu0 %v2878
        %v3019 = vpop.f32.mrb[0].mxu0
        %v3020 = vadd.f32 %v2903, %v3019
        %v3021 = vpop.f32.mrb[0].mxu0
        %v3022 = vpop.f32.mrb[0].mxu0
        %v3023 = vadd.f32 %v2903, %v3022
        %v3024 = vpop.f32.mrb[0].mxu0
        %3025 = vmatprep.mubr.bf16.mxu0 0
        %3026 = vmatmul.mubr.bf16.gmra.mrb[0].mxu0 %v2879
        %v3027 = vpop.f32.mrb[0].mxu0
        %v3028 = vadd.f32 %v2903, %v3027
        %v3029 = vpop.f32.mrb[0].mxu0
        %v3030 = vpop.f32.mrb[0].mxu0
        %v3031 = vadd.f32 %v2903, %v3030
        %v3032 = vpop.f32.mrb[0].mxu0
        %3033 = vmatprep.mubr.bf16.mxu0 0
        %3034 = vmatmul.mubr.bf16.gmra.mrb[0].mxu0 %v2880
        %v3035 = vpop.f32.mrb[0].mxu0
        %v3036 = vadd.f32 %v2903, %v3035
        %v3037 = vpop.f32.mrb[0].mxu0
        %v3038 = vpop.f32.mrb[0].mxu0
        %v3039 = vadd.f32 %v2903, %v3038
        %v3040 = vpop.f32.mrb[0].mxu0
        %3041 = vmatprep.mubr.bf16.mxu0 0
        %3042 = vmatmul.mubr.bf16.gmra.mrb[0].mxu0 %v2881
        %v3043 = vpop.f32.mrb[0].mxu0
        %v3044 = vadd.f32 %v2903, %v3043
        %v3045 = vpop.f32.mrb[0].mxu0
        %v3046 = vpop.f32.mrb[0].mxu0
        %v3047 = vadd.f32 %v2903, %v3046
        %v3048 = vpop.f32.mrb[0].mxu0
        %3049 = vdwg.mxu0
        %3050 = vst [vmem:[%s428] sm:$0xff] %v2988
        %3051 = vst [vmem:[%s428 + $0x8] sm:$0xff] %v2991
        %3052 = vst [vmem:[%s428 + $0x10] sm:$0xff] %v2996
        %3053 = vst [vmem:[%s428 + $0x18] sm:$0xff] %v2999
        %3054 = vst [vmem:[%s428 + $0x20] sm:$0xff] %v3004
        %3055 = vst [vmem:[%s428 + $0x28] sm:$0xff] %v3007
        %3056 = vst [vmem:[%s428 + $0x30] sm:$0xff] %v3012
        %3057 = vst [vmem:[%s428 + $0x38] sm:$0xff] %v3015
        %3058 = vst [vmem:[%s428 + $0x40] sm:$0xff] %v3020
        %3059 = vst [vmem:[%s428 + $0x48] sm:$0xff] %v3023
        %3060 = vst [vmem:[%s428 + $0x50] sm:$0xff] %v3028
        %3061 = vst [vmem:[%s428 + $0x58] sm:$0xff] %v3031
        %3062 = vst [vmem:[%s428 + $0x60] sm:$0xff] %v3036
        %3063 = vst [vmem:[%s428 + $0x68] sm:$0xff] %v3039
        %3064 = vst [vmem:[%s428 + $0x70] sm:$0xff] %v3044
        %3065 = vst [vmem:[%s428 + $0x78] sm:$0xff] %v3047
        %s3066 = smul.u32 16, %s24
        %p3067 = scmp.lt.s32.totalorder %s3066, 31
        %s3068 = scalar_select %p3067, %s3066, 31
        %s3069 = smul.addr %s3068, 8
        %s3070 = scalar_lea.vmem %s11, %s3069
        // Predicated region
        $region77: #{net_critic_forward.1} parent=63 // pred_check
          %p3071 = pneg %p278
        $region78: #{net_critic_forward.1} parent=63 // pred_check_branch
          %3073 = sbr.rel (%p3071) target = $region80
        $region79: #{net_critic_forward.1} parent=63 // pred_region
          %s3074 = smul.u32 16, %s24
        $region80: #{net_critic_forward.1} parent=63 // pred_fallthru
          _
      $region64: #{net_critic_forward.1} parent=5 // pred_fallthru
        _
      %p3075 = scmp.le.s32.totalorder 2, %s19
      // Predicated region
      $region81: #{net_critic_forward.1} parent=5 // pred_check
        %p3076 = pneg %p3075
      $region82: #{net_critic_forward.1} parent=5 // pred_check_branch
        %3078 = sbr.rel (%p3076) target = $region84
      $region83: #{net_critic_forward.1} parent=5 // pred_region
        %s3079 = ssub.s32 %s19, 2
        // Predicated region
        $region85: #{net_critic_forward.1} parent=83 // pred_check
          %p3080 = pneg %p284
        $region86: #{net_critic_forward.1} parent=83 // pred_check_branch
          %3082 = sbr.rel (%p3080) target = $region88
        $region87: #{net_critic_forward.1} parent=83 // pred_region
          %s3083 = smul.u32 16, %s25
          %p3084 = scmp.lt.s32.totalorder %s3083, 31
          %s3085 = scalar_select %p3084, %s3083, 31
          %s3086 = smul.addr %s3085, 8
          %s3087 = scalar_lea.vmem %s11, %s3086
        $region88: #{net_critic_forward.1} parent=83 // pred_fallthru
          _
      $region84: #{net_critic_forward.1} parent=5 // pred_fallthru
        _
    $region6: #{net_critic_forward.1} parent=1 // loop_footer
      %s23 = sadd.s32 1, %s19
    $region7: #{net_critic_forward.1} parent=1 // loop_footer_branch
      %18 = sbr.rel target = $region3
    $region8: #{net_critic_forward.1} parent=1 // loop_exit
      _
    %3088 = vsyncpa [#allocation3], 1
    %s3089 = scalar_lea.sflag [#allocation3], 1
    %3090 = vsyncpa %s3089, 1
    %3091 = vsyncpa [#allocation5], 1

</llo_original>
